<compile_context>
chip_gen: v5e
topology: v5e:2x2
jax: 0.10.0
libtpu: 0.0.40
codegen_flags: <defaults>
</compile_context>

<pallas_src>
import jax
import jax.numpy as jnp
from jax.experimental import pallas as pl
from jax.experimental.pallas import tpu as pltpu

# Logical (PyTorch) layer widths and their 128-lane-padded counterparts.
DIMS = [12, 700, 500, 200, 60, 10]
PADDED = [128, 768, 512, 256, 128, 128]


def mlp_kernel(x_ref,
               w1_ref, b1_ref,
               w2_ref, b2_ref,
               w3_ref, b3_ref,
               w4_ref, b4_ref,
               w5_ref, b5_ref,
               o_ref):
    """One batch tile of the fused MLP.

    Weights are bf16 + lane-padded; activations are carried in fp32 and cast
    to bf16 only at the MXU dot inputs (fp32 accumulation via
    preferred_element_type).
    """
    h = x_ref[...]  # (TB, 128) fp32

    def layer(h, w_ref, b_ref):
        acc = jnp.dot(h.astype(jnp.bfloat16), w_ref[...],
                      preferred_element_type=jnp.float32)
        return acc + b_ref[...]

    h = jnp.maximum(layer(h, w1_ref, b1_ref), 0.0)
    h = jnp.maximum(layer(h, w2_ref, b2_ref), 0.0)
    h = jnp.maximum(layer(h, w3_ref, b3_ref), 0.0)
    h = jnp.maximum(layer(h, w4_ref, b4_ref), 0.0)
    logits = layer(h, w5_ref, b5_ref)
    # sigmoid = 1 / (1 + exp(-x)); exp and reciprocal both ride the EUP slot.
    o_ref[...] = pl.reciprocal(1.0 + jnp.exp(-logits), approx=True)


def _pad_params(params):
    """Cast weights to bf16, keep biases fp32, zero-pad to lane-dense widths."""
    padded = []
    for li, (w, b) in enumerate(params):
        pin, pout = PADDED[li], PADDED[li + 1]
        wp = jnp.zeros((pin, pout), jnp.bfloat16)
        wp = wp.at[:w.shape[0], :w.shape[1]].set(w.astype(jnp.bfloat16))
        bp = jnp.zeros((1, pout), jnp.float32)
        bp = bp.at[:, :b.shape[1]].set(b.astype(jnp.float32))
        padded.append((wp, bp))
    return padded


def _pick_batch_tile(padded_batch):
    # Prefer big MXU-filling tiles (256 on v6e/v7x, 128 on v5e); fall back to a
    # single grid step for small batches (padded_batch is a multiple of 8).
    for tb in (512, 256, 128):
        if padded_batch % tb == 0:
            return tb
    return padded_batch


def mlp_forward(x, params):
    """x: (batch, 12) fp32; params: list of (W[in, out], b[1, out]) fp32."""
    batch, d_in = x.shape
    assert d_in == DIMS[0]

    # Pad batch to a multiple of 8 (sublane) and features to 128 (lane).
    pb = ((batch + 7) // 8) * 8
    xp = jnp.zeros((pb, PADDED[0]), jnp.float32).at[:batch, :d_in].set(x)

    padded_params = _pad_params(params)
    flat_args = [xp]
    for w, b in padded_params:
        flat_args.extend([w, b])

    tb = _pick_batch_tile(pb)
    grid = (pb // tb,)

    # x / out tiled on batch; weights & biases pinned VMEM-resident via
    # constant index_maps (DMA'd once, reused for every batch tile).
    in_specs = [pl.BlockSpec((tb, PADDED[0]), lambda i: (i, 0))]
    for w, b in padded_params:
        in_specs.append(pl.BlockSpec(w.shape, lambda i: (0, 0)))
        in_specs.append(pl.BlockSpec(b.shape, lambda i: (0, 0)))
    out_specs = pl.BlockSpec((tb, PADDED[-1]), lambda i: (i, 0))

    flops = 2 * pb * sum(PADDED[i] * PADDED[i + 1] for i in range(len(PADDED) - 1))
    bytes_weights = sum(int(w.size) * 2 + int(b.size) * 4 for w, b in padded_params)
    bytes_io = int(xp.size) * 4 + pb * PADDED[-1] * 4
    cost = pl.CostEstimate(flops=flops,
                           transcendentals=pb * PADDED[-1],
                           bytes_accessed=bytes_weights + bytes_io)

    out_padded = pl.pallas_call(
        mlp_kernel,
        out_shape=jax.ShapeDtypeStruct((pb, PADDED[-1]), jnp.float32),
        grid=grid,
        in_specs=in_specs,
        out_specs=out_specs,
        compiler_params=pltpu.CompilerParams(
            dimension_semantics=("parallel",)),
        cost_estimate=cost,
    )(*flat_args)

    # Slice away batch / lane padding.
    return out_padded[:batch, :DIMS[-1]]


def init_params(key):
    """Deterministic init mimicking PyTorch Linear's uniform(-1/sqrt(fan_in), +)."""
    params = []
    for i in range(len(DIMS) - 1):
        fan_in, fan_out = DIMS[i], DIMS[i + 1]
        key, kw, kb = jax.random.split(key, 3)
        bound = 1.0 / jnp.sqrt(jnp.float32(fan_in))
        w = jax.random.uniform(kw, (fan_in, fan_out), jnp.float32, -bound, bound)
        b = jax.random.uniform(kb, (1, fan_out), jnp.float32, -bound, bound)
        params.append((w, b))
    return params


def reference_forward(x, params):
    h = x
    for i, (w, b) in enumerate(params):
        h = h @ w + b
        if i < len(params) - 1:
            h = jnp.maximum(h, 0.0)
        else:
            h = jax.nn.sigmoid(h)
    return h


if __name__ == "__main__":
    key = jax.random.PRNGKey(0)
    key, kx = jax.random.split(key)

    batch = 8
    x = jax.random.normal(kx, (batch, 12), dtype=jnp.float32)
    params = init_params(key)

    out = mlp_forward(x, params)
    out = jax.block_until_ready(out)

    ref = reference_forward(x, params)
    assert out.shape == (batch, 10), out.shape
    # bf16 weights + approx reciprocal => loosen tolerance vs fp32 reference.
    assert jnp.allclose(out, ref, atol=2e-2, rtol=2e-2), "mismatch vs reference"

    print("KERNEL_OK")
</pallas_src>

<mosaic_0001>
module attributes {stable_mosaic.version = 11 : i64} {
  func.func @mlp_kernel(%arg0: i32, %arg1: memref<8x128xf32, #tpu.memory_space<vmem>>, %arg2: memref<128x768xbf16, #tpu.memory_space<vmem>>, %arg3: memref<1x768xf32, #tpu.memory_space<vmem>>, %arg4: memref<768x512xbf16, #tpu.memory_space<vmem>>, %arg5: memref<1x512xf32, #tpu.memory_space<vmem>>, %arg6: memref<512x256xbf16, #tpu.memory_space<vmem>>, %arg7: memref<1x256xf32, #tpu.memory_space<vmem>>, %arg8: memref<256x128xbf16, #tpu.memory_space<vmem>>, %arg9: memref<1x128xf32, #tpu.memory_space<vmem>>, %arg10: memref<128x128xbf16, #tpu.memory_space<vmem>>, %arg11: memref<1x128xf32, #tpu.memory_space<vmem>>, %arg12: memref<8x128xf32, #tpu.memory_space<vmem>>) attributes {dimension_semantics = [#tpu.dimension_semantics<parallel>], iteration_bounds = array<i64: 1>, scalar_prefetch = 0 : i64, scratch_operands = 0 : i64, tpu.core_type = #tpu.core_type<tc>, window_params = [{transform_indices = @transform_0, window_bounds = array<i64: 8, 128>}, {pipeline_mode = #tpu.pipeline_mode<synchronous>, transform_indices = @transform_1, window_bounds = array<i64: 128, 768>}, {pipeline_mode = #tpu.pipeline_mode<synchronous>, transform_indices = @transform_2, window_bounds = array<i64: 1, 768>}, {pipeline_mode = #tpu.pipeline_mode<synchronous>, transform_indices = @transform_3, window_bounds = array<i64: 768, 512>}, {pipeline_mode = #tpu.pipeline_mode<synchronous>, transform_indices = @transform_4, window_bounds = array<i64: 1, 512>}, {pipeline_mode = #tpu.pipeline_mode<synchronous>, transform_indices = @transform_5, window_bounds = array<i64: 512, 256>}, {pipeline_mode = #tpu.pipeline_mode<synchronous>, transform_indices = @transform_6, window_bounds = array<i64: 1, 256>}, {pipeline_mode = #tpu.pipeline_mode<synchronous>, transform_indices = @transform_7, window_bounds = array<i64: 256, 128>}, {pipeline_mode = #tpu.pipeline_mode<synchronous>, transform_indices = @transform_8, window_bounds = array<i64: 1, 128>}, {pipeline_mode = #tpu.pipeline_mode<synchronous>, transform_indices = @transform_9, window_bounds = array<i64: 128, 128>}, {pipeline_mode = #tpu.pipeline_mode<synchronous>, transform_indices = @transform_10, window_bounds = array<i64: 1, 128>}, {transform_indices = @transform_11, window_bounds = array<i64: 8, 128>}]} {
    %c0 = arith.constant 0 : index
    %c0_0 = arith.constant 0 : index
    %0 = vector.load %arg1[%c0, %c0_0] : memref<8x128xf32, #tpu.memory_space<vmem>>, vector<8x128xf32>
    %1 = arith.truncf %0 : vector<8x128xf32> to vector<8x128xbf16>
    %c0_1 = arith.constant 0 : index
    %c0_2 = arith.constant 0 : index
    %2 = vector.load %arg2[%c0_1, %c0_2] : memref<128x768xbf16, #tpu.memory_space<vmem>>, vector<128x768xbf16>
    %cst = arith.constant dense<0.000000e+00> : vector<8x768xf32>
    %3 = tpu.matmul %1, %2, %cst {dimension_numbers = #tpu.dot_dimension_numbers<[1], [0], [0], [1], [0, 0, 1, 1], [], []>} : vector<8x128xbf16>, vector<128x768xbf16>, vector<8x768xf32> -> vector<8x768xf32>
    %c0_3 = arith.constant 0 : index
    %c0_4 = arith.constant 0 : index
    %4 = vector.load %arg3[%c0_3, %c0_4] : memref<1x768xf32, #tpu.memory_space<vmem>>, vector<1x768xf32>
    %5 = vector.broadcast %4 : vector<1x768xf32> to vector<8x768xf32>
    %6 = arith.addf %3, %5 : vector<8x768xf32>
    %cst_5 = arith.constant 0.000000e+00 : f32
    %7 = vector.broadcast %cst_5 : f32 to vector<8x768xf32>
    %8 = arith.maximumf %6, %7 : vector<8x768xf32>
    %9 = arith.truncf %8 : vector<8x768xf32> to vector<8x768xbf16>
    %c0_6 = arith.constant 0 : index
    %c0_7 = arith.constant 0 : index
    %10 = vector.load %arg4[%c0_6, %c0_7] : memref<768x512xbf16, #tpu.memory_space<vmem>>, vector<768x512xbf16>
    %cst_8 = arith.constant dense<0.000000e+00> : vector<8x512xf32>
    %11 = tpu.matmul %9, %10, %cst_8 {dimension_numbers = #tpu.dot_dimension_numbers<[1], [0], [0], [1], [0, 0, 1, 1], [], []>} : vector<8x768xbf16>, vector<768x512xbf16>, vector<8x512xf32> -> vector<8x512xf32>
    %c0_9 = arith.constant 0 : index
    %c0_10 = arith.constant 0 : index
    %12 = vector.load %arg5[%c0_9, %c0_10] : memref<1x512xf32, #tpu.memory_space<vmem>>, vector<1x512xf32>
    %13 = vector.broadcast %12 : vector<1x512xf32> to vector<8x512xf32>
    %14 = arith.addf %11, %13 : vector<8x512xf32>
    %cst_11 = arith.constant 0.000000e+00 : f32
    %15 = vector.broadcast %cst_11 : f32 to vector<8x512xf32>
    %16 = arith.maximumf %14, %15 : vector<8x512xf32>
    %17 = arith.truncf %16 : vector<8x512xf32> to vector<8x512xbf16>
    %c0_12 = arith.constant 0 : index
    %c0_13 = arith.constant 0 : index
    %18 = vector.load %arg6[%c0_12, %c0_13] : memref<512x256xbf16, #tpu.memory_space<vmem>>, vector<512x256xbf16>
    %cst_14 = arith.constant dense<0.000000e+00> : vector<8x256xf32>
    %19 = tpu.matmul %17, %18, %cst_14 {dimension_numbers = #tpu.dot_dimension_numbers<[1], [0], [0], [1], [0, 0, 1, 1], [], []>} : vector<8x512xbf16>, vector<512x256xbf16>, vector<8x256xf32> -> vector<8x256xf32>
    %c0_15 = arith.constant 0 : index
    %c0_16 = arith.constant 0 : index
    %20 = vector.load %arg7[%c0_15, %c0_16] : memref<1x256xf32, #tpu.memory_space<vmem>>, vector<1x256xf32>
    %21 = vector.broadcast %20 : vector<1x256xf32> to vector<8x256xf32>
    %22 = arith.addf %19, %21 : vector<8x256xf32>
    %cst_17 = arith.constant 0.000000e+00 : f32
    %23 = vector.broadcast %cst_17 : f32 to vector<8x256xf32>
    %24 = arith.maximumf %22, %23 : vector<8x256xf32>
    %25 = arith.truncf %24 : vector<8x256xf32> to vector<8x256xbf16>
    %c0_18 = arith.constant 0 : index
    %c0_19 = arith.constant 0 : index
    %26 = vector.load %arg8[%c0_18, %c0_19] : memref<256x128xbf16, #tpu.memory_space<vmem>>, vector<256x128xbf16>
    %cst_20 = arith.constant dense<0.000000e+00> : vector<8x128xf32>
    %27 = tpu.matmul %25, %26, %cst_20 {dimension_numbers = #tpu.dot_dimension_numbers<[1], [0], [0], [1], [0, 0, 1, 1], [], []>} : vector<8x256xbf16>, vector<256x128xbf16>, vector<8x128xf32> -> vector<8x128xf32>
    %c0_21 = arith.constant 0 : index
    %c0_22 = arith.constant 0 : index
    %28 = vector.load %arg9[%c0_21, %c0_22] : memref<1x128xf32, #tpu.memory_space<vmem>>, vector<1x128xf32>
    %29 = vector.broadcast %28 : vector<1x128xf32> to vector<8x128xf32>
    %30 = arith.addf %27, %29 : vector<8x128xf32>
    %cst_23 = arith.constant 0.000000e+00 : f32
    %31 = vector.broadcast %cst_23 : f32 to vector<8x128xf32>
    %32 = arith.maximumf %30, %31 : vector<8x128xf32>
    %33 = arith.truncf %32 : vector<8x128xf32> to vector<8x128xbf16>
    %c0_24 = arith.constant 0 : index
    %c0_25 = arith.constant 0 : index
    %34 = vector.load %arg10[%c0_24, %c0_25] : memref<128x128xbf16, #tpu.memory_space<vmem>>, vector<128x128xbf16>
    %cst_26 = arith.constant dense<0.000000e+00> : vector<8x128xf32>
    %35 = tpu.matmul %33, %34, %cst_26 {dimension_numbers = #tpu.dot_dimension_numbers<[1], [0], [0], [1], [0, 0, 1, 1], [], []>} : vector<8x128xbf16>, vector<128x128xbf16>, vector<8x128xf32> -> vector<8x128xf32>
    %c0_27 = arith.constant 0 : index
    %c0_28 = arith.constant 0 : index
    %36 = vector.load %arg11[%c0_27, %c0_28] : memref<1x128xf32, #tpu.memory_space<vmem>>, vector<1x128xf32>
    %37 = vector.broadcast %36 : vector<1x128xf32> to vector<8x128xf32>
    %38 = arith.addf %35, %37 : vector<8x128xf32>
    %cst_29 = arith.constant 0.000000e+00 : f32
    %39 = vector.broadcast %cst_29 : f32 to vector<8x128xf32>
    %40 = arith.subf %39, %38 : vector<8x128xf32>
    %41 = math.exp %40 : vector<8x128xf32>
    %cst_30 = arith.constant 1.000000e+00 : f32
    %42 = vector.broadcast %cst_30 : f32 to vector<8x128xf32>
    %43 = arith.addf %42, %41 : vector<8x128xf32>
    %44 = tpu.reciprocal %43 {approx = true} : vector<8x128xf32> -> vector<8x128xf32>
    %c0_31 = arith.constant 0 : index
    %c0_32 = arith.constant 0 : index
    %45 = vector.load %arg12[%c0_31, %c0_32] : memref<8x128xf32, #tpu.memory_space<vmem>>, vector<8x128xf32>
    tpu.vector_store %arg12[%c0_31, %c0_32], %44 {strides = array<i32>} : memref<8x128xf32, #tpu.memory_space<vmem>>, vector<8x128xf32>,
    return
  }
  func.func @transform_0(%arg0: i32) -> (i32, i32) {
    %c0_i32 = arith.constant 0 : i32
    %c0_i32_0 = arith.constant 0 : i32
    return %arg0, %c0_i32 : i32, i32
  }
  func.func @transform_1(%arg0: i32) -> (i32, i32) {
    %c0_i32 = arith.constant 0 : i32
    %c0_i32_0 = arith.constant 0 : i32
    %c0_i32_1 = arith.constant 0 : i32
    return %c0_i32, %c0_i32_0 : i32, i32
  }
  func.func @transform_2(%arg0: i32) -> (i32, i32) {
    %c0_i32 = arith.constant 0 : i32
    %c0_i32_0 = arith.constant 0 : i32
    %c0_i32_1 = arith.constant 0 : i32
    return %c0_i32, %c0_i32_0 : i32, i32
  }
  func.func @transform_3(%arg0: i32) -> (i32, i32) {
    %c0_i32 = arith.constant 0 : i32
    %c0_i32_0 = arith.constant 0 : i32
    %c0_i32_1 = arith.constant 0 : i32
    return %c0_i32, %c0_i32_0 : i32, i32
  }
  func.func @transform_4(%arg0: i32) -> (i32, i32) {
    %c0_i32 = arith.constant 0 : i32
    %c0_i32_0 = arith.constant 0 : i32
    %c0_i32_1 = arith.constant 0 : i32
    return %c0_i32, %c0_i32_0 : i32, i32
  }
  func.func @transform_5(%arg0: i32) -> (i32, i32) {
    %c0_i32 = arith.constant 0 : i32
    %c0_i32_0 = arith.constant 0 : i32
    %c0_i32_1 = arith.constant 0 : i32
    return %c0_i32, %c0_i32_0 : i32, i32
  }
  func.func @transform_6(%arg0: i32) -> (i32, i32) {
    %c0_i32 = arith.constant 0 : i32
    %c0_i32_0 = arith.constant 0 : i32
    %c0_i32_1 = arith.constant 0 : i32
    return %c0_i32, %c0_i32_0 : i32, i32
  }
  func.func @transform_7(%arg0: i32) -> (i32, i32) {
    %c0_i32 = arith.constant 0 : i32
    %c0_i32_0 = arith.constant 0 : i32
    %c0_i32_1 = arith.constant 0 : i32
    return %c0_i32, %c0_i32_0 : i32, i32
  }
  func.func @transform_8(%arg0: i32) -> (i32, i32) {
    %c0_i32 = arith.constant 0 : i32
    %c0_i32_0 = arith.constant 0 : i32
    %c0_i32_1 = arith.constant 0 : i32
    return %c0_i32, %c0_i32_0 : i32, i32
  }
  func.func @transform_9(%arg0: i32) -> (i32, i32) {
    %c0_i32 = arith.constant 0 : i32
    %c0_i32_0 = arith.constant 0 : i32
    %c0_i32_1 = arith.constant 0 : i32
    return %c0_i32, %c0_i32_0 : i32, i32
  }
  func.func @transform_10(%arg0: i32) -> (i32, i32) {
    %c0_i32 = arith.constant 0 : i32
    %c0_i32_0 = arith.constant 0 : i32
    %c0_i32_1 = arith.constant 0 : i32
    return %c0_i32, %c0_i32_0 : i32, i32
  }
  func.func @transform_11(%arg0: i32) -> (i32, i32) {
    %c0_i32 = arith.constant 0 : i32
    %c0_i32_0 = arith.constant 0 : i32
    return %arg0, %c0_i32 : i32, i32
  }
}

</mosaic_0001>

<llo_original>
// kernel: tpu_custom_call.1
$region0: #{tpu_custom_call.1}
  #allocation0 [shape = 'u32[]', space=smem, size = 0x4, offset = 0x4, fixed_abs, tag = 'smem constant byte address 0x4 - core index']
  #allocation1 [shape = 'u32[72,128]{1,0:T(1,128)}', space=vmem, size = 0x9000, scoped, tag = 'internal scratch']
  %s0 = inlined_call_operand.hbm [shape: f32[8,128], index: 0, kind: input, shape index: {}]
  %s1 = inlined_call_operand.hbm [shape: bf16[128,768], index: 1, kind: input, shape index: {}]
  %s2 = inlined_call_operand.hbm [shape: f32[1,768], index: 2, kind: input, shape index: {}]
  %s3 = inlined_call_operand.hbm [shape: bf16[768,512], index: 3, kind: input, shape index: {}]
  %s4 = inlined_call_operand.hbm [shape: f32[1,512], index: 4, kind: input, shape index: {}]
  %s5 = inlined_call_operand.hbm [shape: bf16[512,256], index: 5, kind: input, shape index: {}]
  %s6 = inlined_call_operand.vmem [shape: f32[1,256], index: 6, kind: input, shape index: {}]
  %s7 = inlined_call_operand.hbm [shape: bf16[256,128], index: 7, kind: input, shape index: {}]
  %s8 = inlined_call_operand.vmem [shape: f32[1,128], index: 8, kind: input, shape index: {}]
  %s9 = inlined_call_operand.hbm [shape: bf16[128,128], index: 9, kind: input, shape index: {}]
  %s10 = inlined_call_operand.vmem [shape: f32[1,128], index: 10, kind: input, shape index: {}]
  %s11 = inlined_call_operand.hbm [shape: f32[8,128], index: 11, kind: output, shape index: {}]
  %s12 = sld [smem:[#allocation0]]
  $region86: #{tpu_custom_call.1} parent=0
    _
  %s14 = ssub.s32 1, %s12
  %s15 = scalar_select 0, %s14, %s12
  $region1: #{tpu_custom_call.1} parent=0
    #allocation2 [shape = 'u8[4096]{0}', space=vmem, size = 0x1000, scoped, tag = 'input window, operand 0, single buffered']
    #allocation3 [shape = 's32[1]{0}', space=sflag, size = 0x4, scoped, tag = 'scoped memory for tpu_custom_call.1']
    #allocation4 [shape = 's32[1]{0}', space=sflag, size = 0x4, scoped, tag = 'scoped memory for tpu_custom_call.1']
    #allocation5 [shape = 'u8[196608]{0}', space=vmem, size = 0x30000, scoped, tag = 'input window, operand 1, single buffered']
    #allocation6 [shape = 's32[1]{0}', space=sflag, size = 0x4, scoped, tag = 'scoped memory for tpu_custom_call.1']
    #allocation7 [shape = 'u8[3072]{0}', space=vmem, size = 0xc00, scoped, tag = 'input window, operand 2, single buffered']
    #allocation8 [shape = 'u8[786432]{0}', space=vmem, size = 0xc0000, scoped, tag = 'input window, operand 3, single buffered']
    #allocation9 [shape = 's32[1]{0}', space=sflag, size = 0x4, scoped, tag = 'scoped memory for tpu_custom_call.1']
    #allocation10 [shape = 'u8[2048]{0}', space=vmem, size = 0x800, scoped, tag = 'input window, operand 4, single buffered']
    #allocation11 [shape = 'u8[262144]{0}', space=vmem, size = 0x40000, scoped, tag = 'input window, operand 5, single buffered']
    #allocation12 [shape = 's32[1]{0}', space=sflag, size = 0x4, scoped, tag = 'scoped memory for tpu_custom_call.1']
    #allocation13 [shape = 'u8[65536]{0}', space=vmem, size = 0x10000, scoped, tag = 'input window, operand 7, single buffered']
    #allocation14 [shape = 'u8[32768]{0}', space=vmem, size = 0x8000, scoped, tag = 'input window, operand 9, single buffered']
    #allocation15 [shape = 's32[1]{0}', space=sflag, size = 0x4, scoped, tag = 'scoped memory for tpu_custom_call.1']
    #allocation16 [shape = 'u8[4096]{0}', space=vmem, size = 0x1000, scoped, tag = 'output window, operand 0, single buffered']
    %16 = vsyncpa [#allocation3], 0
    %17 = vsyncpa [#allocation6], 0
    %18 = vsyncpa [#allocation9], 0
    %19 = vsyncpa [#allocation12], 0
    %20 = vsyncpa [#allocation15], 0
    %21 = vsyncpa [#allocation4], 0
    // Predicated region
    $region2: #{tpu_custom_call.1} parent=1 // pred_check
      _
    $region3: #{tpu_custom_call.1} parent=1 // pred_check_branch
      %23 = sbr.rel (0) target = $region5
    $region4: #{tpu_custom_call.1} parent=1 // pred_region
      %25 = vsyncadd [#allocation3], 0
      %s27 = sshll.u32 %s0, 4
      %s28 = int_to_ptr.hbm [resolvable:$true] %s27
      %s29 = sshll.u32 [#allocation2], 4
      %s30 = int_to_ptr.vmem [resolvable:$true] %s29
      %32 = dma.hbm_to_vmem [thread:$0]  %s28, 128, %s30, [#allocation3]
    $region5: #{tpu_custom_call.1} parent=1 // pred_fallthru
      _
    // Predicated region
    $region6: #{tpu_custom_call.1} parent=1 // pred_check
      _
    $region7: #{tpu_custom_call.1} parent=1 // pred_check_branch
      %34 = sbr.rel (0) target = $region9
    $region8: #{tpu_custom_call.1} parent=1 // pred_region
      %36 = vsyncadd [#allocation6], 0
      %s37 = sshll.u32 %s1, 4
      %s38 = int_to_ptr.hbm [resolvable:$true] %s37
      %s39 = sshll.u32 [#allocation5], 4
      %s40 = int_to_ptr.vmem [resolvable:$true] %s39
      %45 = dma.hbm_to_vmem [thread:$0]  %s38, 6144, %s40, [#allocation6], 384, 384, 24
    $region9: #{tpu_custom_call.1} parent=1 // pred_fallthru
      _
    // Predicated region
    $region10: #{tpu_custom_call.1} parent=1 // pred_check
      _
    $region11: #{tpu_custom_call.1} parent=1 // pred_check_branch
      %47 = sbr.rel (0) target = $region13
    $region12: #{tpu_custom_call.1} parent=1 // pred_region
      %49 = vsyncadd [#allocation6], 0
      %s51 = sshll.u32 %s2, 4
      %s52 = int_to_ptr.hbm [resolvable:$true] %s51
      %s53 = sshll.u32 [#allocation7], 4
      %s54 = int_to_ptr.vmem [resolvable:$true] %s53
      %56 = dma.hbm_to_vmem [thread:$0]  %s52, 96, %s54, [#allocation6]
    $region13: #{tpu_custom_call.1} parent=1 // pred_fallthru
      _
    // Predicated region
    $region14: #{tpu_custom_call.1} parent=1 // pred_check
      _
    $region15: #{tpu_custom_call.1} parent=1 // pred_check_branch
      %58 = sbr.rel (0) target = $region17
    $region16: #{tpu_custom_call.1} parent=1 // pred_region
      %60 = vsyncadd [#allocation9], 0
      %s61 = sshll.u32 %s3, 4
      %s62 = int_to_ptr.hbm [resolvable:$true] %s61
      %s63 = sshll.u32 [#allocation8], 4
      %s64 = int_to_ptr.vmem [resolvable:$true] %s63
      %69 = dma.hbm_to_vmem [thread:$0]  %s62, 24576, %s64, [#allocation9], 256, 256, 16
    $region17: #{tpu_custom_call.1} parent=1 // pred_fallthru
      _
    // Predicated region
    $region18: #{tpu_custom_call.1} parent=1 // pred_check
      _
    $region19: #{tpu_custom_call.1} parent=1 // pred_check_branch
      %71 = sbr.rel (0) target = $region21
    $region20: #{tpu_custom_call.1} parent=1 // pred_region
      %73 = vsyncadd [#allocation9], 0
      %s75 = sshll.u32 %s4, 4
      %s76 = int_to_ptr.hbm [resolvable:$true] %s75
      %s77 = sshll.u32 [#allocation10], 4
      %s78 = int_to_ptr.vmem [resolvable:$true] %s77
      %80 = dma.hbm_to_vmem [thread:$0]  %s76, 64, %s78, [#allocation9]
    $region21: #{tpu_custom_call.1} parent=1 // pred_fallthru
      _
    // Predicated region
    $region22: #{tpu_custom_call.1} parent=1 // pred_check
      _
    $region23: #{tpu_custom_call.1} parent=1 // pred_check_branch
      %82 = sbr.rel (0) target = $region25
    $region24: #{tpu_custom_call.1} parent=1 // pred_region
      %84 = vsyncadd [#allocation12], 0
      %s85 = sshll.u32 %s5, 4
      %s86 = int_to_ptr.hbm [resolvable:$true] %s85
      %s87 = sshll.u32 [#allocation11], 4
      %s88 = int_to_ptr.vmem [resolvable:$true] %s87
      %93 = dma.hbm_to_vmem [thread:$0]  %s86, 8192, %s88, [#allocation12], 128, 128, 8
    $region25: #{tpu_custom_call.1} parent=1 // pred_fallthru
      _
    // Predicated region
    $region26: #{tpu_custom_call.1} parent=1 // pred_check
      _
    $region27: #{tpu_custom_call.1} parent=1 // pred_check_branch
      %95 = sbr.rel (0) target = $region29
    $region28: #{tpu_custom_call.1} parent=1 // pred_region
      _
    $region29: #{tpu_custom_call.1} parent=1 // pred_fallthru
      _
    // Predicated region
    $region30: #{tpu_custom_call.1} parent=1 // pred_check
      _
    $region31: #{tpu_custom_call.1} parent=1 // pred_check_branch
      %97 = sbr.rel (0) target = $region33
    $region32: #{tpu_custom_call.1} parent=1 // pred_region
      %99 = vsyncadd [#allocation12], 0
      %s100 = sshll.u32 %s7, 4
      %s101 = int_to_ptr.hbm [resolvable:$true] %s100
      %s102 = sshll.u32 [#allocation13], 4
      %s103 = int_to_ptr.vmem [resolvable:$true] %s102
      %108 = dma.hbm_to_vmem [thread:$0]  %s101, 2048, %s103, [#allocation12], 64, 64, 4
    $region33: #{tpu_custom_call.1} parent=1 // pred_fallthru
      _
    // Predicated region
    $region34: #{tpu_custom_call.1} parent=1 // pred_check
      _
    $region35: #{tpu_custom_call.1} parent=1 // pred_check_branch
      %110 = sbr.rel (0) target = $region37
    $region36: #{tpu_custom_call.1} parent=1 // pred_region
      _
    $region37: #{tpu_custom_call.1} parent=1 // pred_fallthru
      _
    // Predicated region
    $region38: #{tpu_custom_call.1} parent=1 // pred_check
      _
    $region39: #{tpu_custom_call.1} parent=1 // pred_check_branch
      %112 = sbr.rel (0) target = $region41
    $region40: #{tpu_custom_call.1} parent=1 // pred_region
      %114 = vsyncadd [#allocation15], 0
      %s115 = sshll.u32 %s9, 4
      %s116 = int_to_ptr.hbm [resolvable:$true] %s115
      %s117 = sshll.u32 [#allocation14], 4
      %s118 = int_to_ptr.vmem [resolvable:$true] %s117
      %123 = dma.hbm_to_vmem [thread:$0]  %s116, 1024, %s118, [#allocation15], 64, 64, 4
    $region41: #{tpu_custom_call.1} parent=1 // pred_fallthru
      _
    // Predicated region
    $region42: #{tpu_custom_call.1} parent=1 // pred_check
      _
    $region43: #{tpu_custom_call.1} parent=1 // pred_check_branch
      %125 = sbr.rel (0) target = $region45
    $region44: #{tpu_custom_call.1} parent=1 // pred_region
      _
    $region45: #{tpu_custom_call.1} parent=1 // pred_fallthru
      _
    // Predicated region
    $region46: #{tpu_custom_call.1} parent=1 // pred_check
      _
    $region47: #{tpu_custom_call.1} parent=1 // pred_check_branch
      %127 = sbr.rel (0) target = $region49
    $region48: #{tpu_custom_call.1} parent=1 // pred_region
      %129 = dma.done [#allocation3], 128
    $region49: #{tpu_custom_call.1} parent=1 // pred_fallthru
      _
    // Predicated region
    $region50: #{tpu_custom_call.1} parent=1 // pred_check
      _
    $region51: #{tpu_custom_call.1} parent=1 // pred_check_branch
      %131 = sbr.rel (0) target = $region53
    $region52: #{tpu_custom_call.1} parent=1 // pred_region
      %133 = dma.done [#allocation6], 6144
    $region53: #{tpu_custom_call.1} parent=1 // pred_fallthru
      _
    // Predicated region
    $region54: #{tpu_custom_call.1} parent=1 // pred_check
      _
    $region55: #{tpu_custom_call.1} parent=1 // pred_check_branch
      %135 = sbr.rel (0) target = $region57
    $region56: #{tpu_custom_call.1} parent=1 // pred_region
      %137 = dma.done [#allocation6], 96
    $region57: #{tpu_custom_call.1} parent=1 // pred_fallthru
      _
    // Predicated region
    $region58: #{tpu_custom_call.1} parent=1 // pred_check
      _
    $region59: #{tpu_custom_call.1} parent=1 // pred_check_branch
      %139 = sbr.rel (0) target = $region61
    $region60: #{tpu_custom_call.1} parent=1 // pred_region
      %141 = dma.done [#allocation9], 24576
    $region61: #{tpu_custom_call.1} parent=1 // pred_fallthru
      _
    // Predicated region
    $region62: #{tpu_custom_call.1} parent=1 // pred_check
      _
    $region63: #{tpu_custom_call.1} parent=1 // pred_check_branch
      %143 = sbr.rel (0) target = $region65
    $region64: #{tpu_custom_call.1} parent=1 // pred_region
      %145 = dma.done [#allocation9], 64
    $region65: #{tpu_custom_call.1} parent=1 // pred_fallthru
      _
    // Predicated region
    $region66: #{tpu_custom_call.1} parent=1 // pred_check
      _
    $region67: #{tpu_custom_call.1} parent=1 // pred_check_branch
      %147 = sbr.rel (0) target = $region69
    $region68: #{tpu_custom_call.1} parent=1 // pred_region
      %149 = dma.done [#allocation12], 8192
    $region69: #{tpu_custom_call.1} parent=1 // pred_fallthru
      _
    // Predicated region
    $region70: #{tpu_custom_call.1} parent=1 // pred_check
      _
    $region71: #{tpu_custom_call.1} parent=1 // pred_check_branch
      %151 = sbr.rel (0) target = $region73
    $region72: #{tpu_custom_call.1} parent=1 // pred_region
      %153 = dma.done [#allocation12], 2048
    $region73: #{tpu_custom_call.1} parent=1 // pred_fallthru
      _
    // Predicated region
    $region74: #{tpu_custom_call.1} parent=1 // pred_check
      _
    $region75: #{tpu_custom_call.1} parent=1 // pred_check_branch
      %155 = sbr.rel (0) target = $region77
    $region76: #{tpu_custom_call.1} parent=1 // pred_region
      %157 = dma.done [#allocation15], 1024
    $region77: #{tpu_custom_call.1} parent=1 // pred_fallthru
      _
    %v158 = vld [vmem:[#allocation2] sm:$0xff]
    %v159 = vpack.c.bf16 %v158, %v158
    %v160 = vld [vmem:[#allocation5] sm:$0xff]
    %v161 = vld [vmem:[#allocation5 + $0x8] sm:$0xff]
    %v162 = vld [vmem:[#allocation5 + $0x10] sm:$0xff]
    %v163 = vld [vmem:[#allocation5 + $0x18] sm:$0xff]
    %v164 = vld [vmem:[#allocation5 + $0x20] sm:$0xff]
    %v165 = vld [vmem:[#allocation5 + $0x28] sm:$0xff]
    %v166 = vld [vmem:[#allocation5 + $0x30] sm:$0xff]
    %v167 = vld [vmem:[#allocation5 + $0x38] sm:$0xff]
    %v168 = vld [vmem:[#allocation5 + $0x40] sm:$0xff]
    %v169 = vld [vmem:[#allocation5 + $0x48] sm:$0xff]
    %v170 = vld [vmem:[#allocation5 + $0x50] sm:$0xff]
    %v171 = vld [vmem:[#allocation5 + $0x58] sm:$0xff]
    %v172 = vld [vmem:[#allocation5 + $0x60] sm:$0xff]
    %v173 = vld [vmem:[#allocation5 + $0x68] sm:$0xff]
    %v174 = vld [vmem:[#allocation5 + $0x70] sm:$0xff]
    %v175 = vld [vmem:[#allocation5 + $0x78] sm:$0xff]
    %v176 = vld [vmem:[#allocation5 + $0x80] sm:$0xff]
    %v177 = vld [vmem:[#allocation5 + $0x88] sm:$0xff]
    %v178 = vld [vmem:[#allocation5 + $0x90] sm:$0xff]
    %v179 = vld [vmem:[#allocation5 + $0x98] sm:$0xff]
    %v180 = vld [vmem:[#allocation5 + $0xa0] sm:$0xff]
    %v181 = vld [vmem:[#allocation5 + $0xa8] sm:$0xff]
    %v182 = vld [vmem:[#allocation5 + $0xb0] sm:$0xff]
    %v183 = vld [vmem:[#allocation5 + $0xb8] sm:$0xff]
    %v184 = vld [vmem:[#allocation5 + $0xc0] sm:$0xff]
    %v185 = vld [vmem:[#allocation5 + $0xc8] sm:$0xff]
    %v186 = vld [vmem:[#allocation5 + $0xd0] sm:$0xff]
    %v187 = vld [vmem:[#allocation5 + $0xd8] sm:$0xff]
    %v188 = vld [vmem:[#allocation5 + $0xe0] sm:$0xff]
    %v189 = vld [vmem:[#allocation5 + $0xe8] sm:$0xff]
    %v190 = vld [vmem:[#allocation5 + $0xf0] sm:$0xff]
    %v191 = vld [vmem:[#allocation5 + $0xf8] sm:$0xff]
    %v192 = vld [vmem:[#allocation5 + $0x100] sm:$0xff]
    %v193 = vld [vmem:[#allocation5 + $0x108] sm:$0xff]
    %v194 = vld [vmem:[#allocation5 + $0x110] sm:$0xff]
    %v195 = vld [vmem:[#allocation5 + $0x118] sm:$0xff]
    %v196 = vld [vmem:[#allocation5 + $0x120] sm:$0xff]
    %v197 = vld [vmem:[#allocation5 + $0x128] sm:$0xff]
    %v198 = vld [vmem:[#allocation5 + $0x130] sm:$0xff]
    %v199 = vld [vmem:[#allocation5 + $0x138] sm:$0xff]
    %v200 = vld [vmem:[#allocation5 + $0x140] sm:$0xff]
    %v201 = vld [vmem:[#allocation5 + $0x148] sm:$0xff]
    %v202 = vld [vmem:[#allocation5 + $0x150] sm:$0xff]
    %v203 = vld [vmem:[#allocation5 + $0x158] sm:$0xff]
    %v204 = vld [vmem:[#allocation5 + $0x160] sm:$0xff]
    %v205 = vld [vmem:[#allocation5 + $0x168] sm:$0xff]
    %v206 = vld [vmem:[#allocation5 + $0x170] sm:$0xff]
    %v207 = vld [vmem:[#allocation5 + $0x178] sm:$0xff]
    %v208 = vld [vmem:[#allocation7] sm:$0x3f]
    %v210 = vperm.slane %v208, 0
    %v211 = vperm.slane %v208, 1
    %v212 = vperm.slane %v208, 2
    %v213 = vperm.slane %v208, 3
    %v214 = vperm.slane %v208, 4
    %v215 = vperm.slane %v208, 5
    %v270 = vunpack.c.l.b16 %v160
    %v271 = vunpack.c.h.b16 %v160
    %v272 = vunpack.c.l.b16 %v161
    %v273 = vunpack.c.h.b16 %v161
    %v274 = vunpack.c.l.b16 %v162
    %v275 = vunpack.c.h.b16 %v162
    %v276 = vunpack.c.l.b16 %v163
    %v277 = vunpack.c.h.b16 %v163
    %v278 = vunpack.c.l.b16 %v164
    %v279 = vunpack.c.h.b16 %v164
    %v280 = vunpack.c.l.b16 %v165
    %v281 = vunpack.c.h.b16 %v165
    %v282 = vunpack.c.l.b16 %v166
    %v283 = vunpack.c.h.b16 %v166
    %v284 = vunpack.c.l.b16 %v167
    %v285 = vunpack.c.h.b16 %v167
    %v286 = vunpack.c.l.b16 %v168
    %v287 = vunpack.c.h.b16 %v168
    %v288 = vunpack.c.l.b16 %v169
    %v289 = vunpack.c.h.b16 %v169
    %v290 = vunpack.c.l.b16 %v170
    %v291 = vunpack.c.h.b16 %v170
    %v292 = vunpack.c.l.b16 %v171
    %v293 = vunpack.c.h.b16 %v171
    %v294 = vunpack.c.l.b16 %v172
    %v295 = vunpack.c.h.b16 %v172
    %v296 = vunpack.c.l.b16 %v173
    %v297 = vunpack.c.h.b16 %v173
    %v298 = vunpack.c.l.b16 %v174
    %v299 = vunpack.c.h.b16 %v174
    %v300 = vunpack.c.l.b16 %v175
    %v301 = vunpack.c.h.b16 %v175
    %v302 = vunpack.c.l.b16 %v176
    %v303 = vunpack.c.h.b16 %v176
    %v304 = vunpack.c.l.b16 %v177
    %v305 = vunpack.c.h.b16 %v177
    %v306 = vunpack.c.l.b16 %v178
    %v307 = vunpack.c.h.b16 %v178
    %v308 = vunpack.c.l.b16 %v179
    %v309 = vunpack.c.h.b16 %v179
    %v310 = vunpack.c.l.b16 %v180
    %v311 = vunpack.c.h.b16 %v180
    %v312 = vunpack.c.l.b16 %v181
    %v313 = vunpack.c.h.b16 %v181
    %v314 = vunpack.c.l.b16 %v182
    %v315 = vunpack.c.h.b16 %v182
    %v316 = vunpack.c.l.b16 %v183
    %v317 = vunpack.c.h.b16 %v183
    %v318 = vunpack.c.l.b16 %v184
    %v319 = vunpack.c.h.b16 %v184
    %v320 = vunpack.c.l.b16 %v185
    %v321 = vunpack.c.h.b16 %v185
    %v322 = vunpack.c.l.b16 %v186
    %v323 = vunpack.c.h.b16 %v186
    %v324 = vunpack.c.l.b16 %v187
    %v325 = vunpack.c.h.b16 %v187
    %v326 = vunpack.c.l.b16 %v188
    %v327 = vunpack.c.h.b16 %v188
    %v328 = vunpack.c.l.b16 %v189
    %v329 = vunpack.c.h.b16 %v189
    %v330 = vunpack.c.l.b16 %v190
    %v331 = vunpack.c.h.b16 %v190
    %v332 = vunpack.c.l.b16 %v191
    %v333 = vunpack.c.h.b16 %v191
    %v334 = vunpack.c.l.b16 %v192
    %v335 = vunpack.c.h.b16 %v192
    %v336 = vunpack.c.l.b16 %v193
    %v337 = vunpack.c.h.b16 %v193
    %v338 = vunpack.c.l.b16 %v194
    %v339 = vunpack.c.h.b16 %v194
    %v340 = vunpack.c.l.b16 %v195
    %v341 = vunpack.c.h.b16 %v195
    %v342 = vunpack.c.l.b16 %v196
    %v343 = vunpack.c.h.b16 %v196
    %v344 = vunpack.c.l.b16 %v197
    %v345 = vunpack.c.h.b16 %v197
    %v346 = vunpack.c.l.b16 %v198
    %v347 = vunpack.c.h.b16 %v198
    %v348 = vunpack.c.l.b16 %v199
    %v349 = vunpack.c.h.b16 %v199
    %v350 = vunpack.c.l.b16 %v200
    %v351 = vunpack.c.h.b16 %v200
    %v352 = vunpack.c.l.b16 %v201
    %v353 = vunpack.c.h.b16 %v201
    %v354 = vunpack.c.l.b16 %v202
    %v355 = vunpack.c.h.b16 %v202
    %v356 = vunpack.c.l.b16 %v203
    %v357 = vunpack.c.h.b16 %v203
    %v358 = vunpack.c.l.b16 %v204
    %v359 = vunpack.c.h.b16 %v204
    %v360 = vunpack.c.l.b16 %v205
    %v361 = vunpack.c.h.b16 %v205
    %v362 = vunpack.c.l.b16 %v206
    %v363 = vunpack.c.h.b16 %v206
    %v364 = vunpack.c.l.b16 %v207
    %v365 = vunpack.c.h.b16 %v207
    %v366 = vpack.c.b16 %v276, %v270
    %v367 = vpack.c.b16 %v277, %v271
    %v368 = vpack.c.b16 %v278, %v272
    %v369 = vpack.c.b16 %v279, %v273
    %v370 = vpack.c.b16 %v280, %v274
    %v371 = vpack.c.b16 %v281, %v275
    %v372 = vpack.c.b16 %v288, %v282
    %v373 = vpack.c.b16 %v289, %v283
    %v374 = vpack.c.b16 %v290, %v284
    %v375 = vpack.c.b16 %v291, %v285
    %v376 = vpack.c.b16 %v292, %v286
    %v377 = vpack.c.b16 %v293, %v287
    %v378 = vpack.c.b16 %v300, %v294
    %v379 = vpack.c.b16 %v301, %v295
    %v380 = vpack.c.b16 %v302, %v296
    %v381 = vpack.c.b16 %v303, %v297
    %v382 = vpack.c.b16 %v304, %v298
    %v383 = vpack.c.b16 %v305, %v299
    %v384 = vpack.c.b16 %v312, %v306
    %v385 = vpack.c.b16 %v313, %v307
    %v386 = vpack.c.b16 %v314, %v308
    %v387 = vpack.c.b16 %v315, %v309
    %v388 = vpack.c.b16 %v316, %v310
    %v389 = vpack.c.b16 %v317, %v311
    %v390 = vpack.c.b16 %v324, %v318
    %v391 = vpack.c.b16 %v325, %v319
    %v392 = vpack.c.b16 %v326, %v320
    %v393 = vpack.c.b16 %v327, %v321
    %v394 = vpack.c.b16 %v328, %v322
    %v395 = vpack.c.b16 %v329, %v323
    %v396 = vpack.c.b16 %v336, %v330
    %v397 = vpack.c.b16 %v337, %v331
    %v398 = vpack.c.b16 %v338, %v332
    %v399 = vpack.c.b16 %v339, %v333
    %v400 = vpack.c.b16 %v340, %v334
    %v401 = vpack.c.b16 %v341, %v335
    %v402 = vpack.c.b16 %v348, %v342
    %v403 = vpack.c.b16 %v349, %v343
    %v404 = vpack.c.b16 %v350, %v344
    %v405 = vpack.c.b16 %v351, %v345
    %v406 = vpack.c.b16 %v352, %v346
    %v407 = vpack.c.b16 %v353, %v347
    %v408 = vpack.c.b16 %v360, %v354
    %v409 = vpack.c.b16 %v361, %v355
    %v410 = vpack.c.b16 %v362, %v356
    %v411 = vpack.c.b16 %v363, %v357
    %v412 = vpack.c.b16 %v364, %v358
    %v413 = vpack.c.b16 %v365, %v359
    %462 = vmatpush.bf16.msra.mxu0 %v408
    %463 = vmatpush.bf16.msra.mxu0 %v402
    %464 = vmatpush.bf16.msra.mxu0 %v396
    %465 = vmatpush.bf16.msra.mxu0 %v390
    %466 = vmatpush.bf16.msra.mxu0 %v384
    %467 = vmatpush.bf16.msra.mxu0 %v378
    %468 = vmatpush.bf16.msra.mxu0 %v372
    %469 = vmatpush.bf16.msra.mxu0 %v366
    %470 = vmatmul.bf16.gmra.mxu0 %v159
    %v471 = vpop.f32.mrf.mxu0
    %v472 = vadd.f32 %v210, %v471
    %v473 = vpop.f32.mrf.mxu0
    %474 = vdwg.mxu0
    %475 = vmatpush.bf16.msra.mxu0 %v409
    %476 = vmatpush.bf16.msra.mxu0 %v403
    %477 = vmatpush.bf16.msra.mxu0 %v397
    %478 = vmatpush.bf16.msra.mxu0 %v391
    %479 = vmatpush.bf16.msra.mxu0 %v385
    %480 = vmatpush.bf16.msra.mxu0 %v379
    %481 = vmatpush.bf16.msra.mxu0 %v373
    %482 = vmatpush.bf16.msra.mxu0 %v367
    %483 = vmatmul.bf16.gmra.mxu0 %v159
    %v484 = vpop.f32.mrf.mxu0
    %v485 = vadd.f32 %v211, %v484
    %v486 = vpop.f32.mrf.mxu0
    %487 = vdwg.mxu0
    %488 = vmatpush.bf16.msra.mxu0 %v410
    %489 = vmatpush.bf16.msra.mxu0 %v404
    %490 = vmatpush.bf16.msra.mxu0 %v398
    %491 = vmatpush.bf16.msra.mxu0 %v392
    %492 = vmatpush.bf16.msra.mxu0 %v386
    %493 = vmatpush.bf16.msra.mxu0 %v380
    %494 = vmatpush.bf16.msra.mxu0 %v374
    %495 = vmatpush.bf16.msra.mxu0 %v368
    %496 = vmatmul.bf16.gmra.mxu0 %v159
    %v497 = vpop.f32.mrf.mxu0
    %v498 = vadd.f32 %v212, %v497
    %v499 = vpop.f32.mrf.mxu0
    %500 = vdwg.mxu0
    %501 = vmatpush.bf16.msra.mxu0 %v411
    %502 = vmatpush.bf16.msra.mxu0 %v405
    %503 = vmatpush.bf16.msra.mxu0 %v399
    %504 = vmatpush.bf16.msra.mxu0 %v393
    %505 = vmatpush.bf16.msra.mxu0 %v387
    %506 = vmatpush.bf16.msra.mxu0 %v381
    %507 = vmatpush.bf16.msra.mxu0 %v375
    %508 = vmatpush.bf16.msra.mxu0 %v369
    %509 = vmatmul.bf16.gmra.mxu0 %v159
    %v510 = vpop.f32.mrf.mxu0
    %v511 = vadd.f32 %v213, %v510
    %v512 = vpop.f32.mrf.mxu0
    %513 = vdwg.mxu0
    %514 = vmatpush.bf16.msra.mxu0 %v412
    %515 = vmatpush.bf16.msra.mxu0 %v406
    %516 = vmatpush.bf16.msra.mxu0 %v400
    %517 = vmatpush.bf16.msra.mxu0 %v394
    %518 = vmatpush.bf16.msra.mxu0 %v388
    %519 = vmatpush.bf16.msra.mxu0 %v382
    %520 = vmatpush.bf16.msra.mxu0 %v376
    %521 = vmatpush.bf16.msra.mxu0 %v370
    %522 = vmatmul.bf16.gmra.mxu0 %v159
    %v523 = vpop.f32.mrf.mxu0
    %v524 = vadd.f32 %v214, %v523
    %v525 = vpop.f32.mrf.mxu0
    %526 = vdwg.mxu0
    %527 = vmatpush.bf16.msra.mxu0 %v413
    %528 = vmatpush.bf16.msra.mxu0 %v407
    %529 = vmatpush.bf16.msra.mxu0 %v401
    %530 = vmatpush.bf16.msra.mxu0 %v395
    %531 = vmatpush.bf16.msra.mxu0 %v389
    %532 = vmatpush.bf16.msra.mxu0 %v383
    %533 = vmatpush.bf16.msra.mxu0 %v377
    %534 = vmatpush.bf16.msra.mxu0 %v371
    %535 = vmatmul.bf16.gmra.mxu0 %v159
    %v536 = vpop.f32.mrf.mxu0
    %v537 = vadd.f32 %v215, %v536
    %v538 = vpop.f32.mrf.mxu0
    %539 = vdwg.mxu0
    %v540 = vmax.f32 %v472, 0.0
    %v541 = vmax.f32 %v485, 0.0
    %v542 = vmax.f32 %v498, 0.0
    %v543 = vmax.f32 %v511, 0.0
    %v544 = vmax.f32 %v524, 0.0
    %v545 = vmax.f32 %v537, 0.0
    %v546 = vpack.c.bf16 %v540, %v540
    %v547 = vpack.c.bf16 %v541, %v541
    %v548 = vpack.c.bf16 %v542, %v542
    %v549 = vpack.c.bf16 %v543, %v543
    %v550 = vpack.c.bf16 %v544, %v544
    %v551 = vpack.c.bf16 %v545, %v545
    %v552 = vld [vmem:[#allocation8] sm:$0xff]
    %v553 = vld [vmem:[#allocation8 + $0x8] sm:$0xff]
    %v554 = vld [vmem:[#allocation8 + $0x10] sm:$0xff]
    %v555 = vld [vmem:[#allocation8 + $0x18] sm:$0xff]
    %v556 = vld [vmem:[#allocation8 + $0x20] sm:$0xff]
    %v557 = vld [vmem:[#allocation8 + $0x28] sm:$0xff]
    %v558 = vld [vmem:[#allocation8 + $0x30] sm:$0xff]
    %v559 = vld [vmem:[#allocation8 + $0x38] sm:$0xff]
    %v560 = vld [vmem:[#allocation8 + $0x40] sm:$0xff]
    %v561 = vld [vmem:[#allocation8 + $0x48] sm:$0xff]
    %v562 = vld [vmem:[#allocation8 + $0x50] sm:$0xff]
    %v563 = vld [vmem:[#allocation8 + $0x58] sm:$0xff]
    %v564 = vld [vmem:[#allocation8 + $0x60] sm:$0xff]
    %v565 = vld [vmem:[#allocation8 + $0x68] sm:$0xff]
    %v566 = vld [vmem:[#allocation8 + $0x70] sm:$0xff]
    %v567 = vld [vmem:[#allocation8 + $0x78] sm:$0xff]
    %v568 = vld [vmem:[#allocation8 + $0x80] sm:$0xff]
    %v569 = vld [vmem:[#allocation8 + $0x88] sm:$0xff]
    %v570 = vld [vmem:[#allocation8 + $0x90] sm:$0xff]
    %v571 = vld [vmem:[#allocation8 + $0x98] sm:$0xff]
    %v572 = vld [vmem:[#allocation8 + $0xa0] sm:$0xff]
    %v573 = vld [vmem:[#allocation8 + $0xa8] sm:$0xff]
    %v574 = vld [vmem:[#allocation8 + $0xb0] sm:$0xff]
    %v575 = vld [vmem:[#allocation8 + $0xb8] sm:$0xff]
    %v576 = vld [vmem:[#allocation8 + $0xc0] sm:$0xff]
    %v577 = vld [vmem:[#allocation8 + $0xc8] sm:$0xff]
    %v578 = vld [vmem:[#allocation8 + $0xd0] sm:$0xff]
    %v579 = vld [vmem:[#allocation8 + $0xd8] sm:$0xff]
    %v580 = vld [vmem:[#allocation8 + $0xe0] sm:$0xff]
    %v581 = vld [vmem:[#allocation8 + $0xe8] sm:$0xff]
    %v582 = vld [vmem:[#allocation8 + $0xf0] sm:$0xff]
    %v583 = vld [vmem:[#allocation8 + $0xf8] sm:$0xff]
    %v584 = vld [vmem:[#allocation8 + $0x100] sm:$0xff]
    %v585 = vld [vmem:[#allocation8 + $0x108] sm:$0xff]
    %v586 = vld [vmem:[#allocation8 + $0x110] sm:$0xff]
    %v587 = vld [vmem:[#allocation8 + $0x118] sm:$0xff]
    %v588 = vld [vmem:[#allocation8 + $0x120] sm:$0xff]
    %v589 = vld [vmem:[#allocation8 + $0x128] sm:$0xff]
    %v590 = vld [vmem:[#allocation8 + $0x130] sm:$0xff]
    %v591 = vld [vmem:[#allocation8 + $0x138] sm:$0xff]
    %v592 = vld [vmem:[#allocation8 + $0x140] sm:$0xff]
    %v593 = vld [vmem:[#allocation8 + $0x148] sm:$0xff]
    %v594 = vld [vmem:[#allocation8 + $0x150] sm:$0xff]
    %v595 = vld [vmem:[#allocation8 + $0x158] sm:$0xff]
    %v596 = vld [vmem:[#allocation8 + $0x160] sm:$0xff]
    %v597 = vld [vmem:[#allocation8 + $0x168] sm:$0xff]
    %v598 = vld [vmem:[#allocation8 + $0x170] sm:$0xff]
    %v599 = vld [vmem:[#allocation8 + $0x178] sm:$0xff]
    %v600 = vld [vmem:[#allocation8 + $0x180] sm:$0xff]
    %v601 = vld [vmem:[#allocation8 + $0x188] sm:$0xff]
    %v602 = vld [vmem:[#allocation8 + $0x190] sm:$0xff]
    %v603 = vld [vmem:[#allocation8 + $0x198] sm:$0xff]
    %v604 = vld [vmem:[#allocation8 + $0x1a0] sm:$0xff]
    %v605 = vld [vmem:[#allocation8 + $0x1a8] sm:$0xff]
    %v606 = vld [vmem:[#allocation8 + $0x1b0] sm:$0xff]
    %v607 = vld [vmem:[#allocation8 + $0x1b8] sm:$0xff]
    %v608 = vld [vmem:[#allocation8 + $0x1c0] sm:$0xff]
    %v609 = vld [vmem:[#allocation8 + $0x1c8] sm:$0xff]
    %v610 = vld [vmem:[#allocation8 + $0x1d0] sm:$0xff]
    %v611 = vld [vmem:[#allocation8 + $0x1d8] sm:$0xff]
    %v612 = vld [vmem:[#allocation8 + $0x1e0] sm:$0xff]
    %v613 = vld [vmem:[#allocation8 + $0x1e8] sm:$0xff]
    %v614 = vld [vmem:[#allocation8 + $0x1f0] sm:$0xff]
    %v615 = vld [vmem:[#allocation8 + $0x1f8] sm:$0xff]
    %v616 = vld [vmem:[#allocation8 + $0x200] sm:$0xff]
    %v617 = vld [vmem:[#allocation8 + $0x208] sm:$0xff]
    %v618 = vld [vmem:[#allocation8 + $0x210] sm:$0xff]
    %v619 = vld [vmem:[#allocation8 + $0x218] sm:$0xff]
    %v620 = vld [vmem:[#allocation8 + $0x220] sm:$0xff]
    %v621 = vld [vmem:[#allocation8 + $0x228] sm:$0xff]
    %v622 = vld [vmem:[#allocation8 + $0x230] sm:$0xff]
    %v623 = vld [vmem:[#allocation8 + $0x238] sm:$0xff]
    %v624 = vld [vmem:[#allocation8 + $0x240] sm:$0xff]
    %v625 = vld [vmem:[#allocation8 + $0x248] sm:$0xff]
    %v626 = vld [vmem:[#allocation8 + $0x250] sm:$0xff]
    %v627 = vld [vmem:[#allocation8 + $0x258] sm:$0xff]
    %v628 = vld [vmem:[#allocation8 + $0x260] sm:$0xff]
    %v629 = vld [vmem:[#allocation8 + $0x268] sm:$0xff]
    %v630 = vld [vmem:[#allocation8 + $0x270] sm:$0xff]
    %v631 = vld [vmem:[#allocation8 + $0x278] sm:$0xff]
    %v632 = vld [vmem:[#allocation8 + $0x280] sm:$0xff]
    %v633 = vld [vmem:[#allocation8 + $0x288] sm:$0xff]
    %v634 = vld [vmem:[#allocation8 + $0x290] sm:$0xff]
    %v635 = vld [vmem:[#allocation8 + $0x298] sm:$0xff]
    %v636 = vld [vmem:[#allocation8 + $0x2a0] sm:$0xff]
    %v637 = vld [vmem:[#allocation8 + $0x2a8] sm:$0xff]
    %v638 = vld [vmem:[#allocation8 + $0x2b0] sm:$0xff]
    %v639 = vld [vmem:[#allocation8 + $0x2b8] sm:$0xff]
    %v640 = vld [vmem:[#allocation8 + $0x2c0] sm:$0xff]
    %v641 = vld [vmem:[#allocation8 + $0x2c8] sm:$0xff]
    %v642 = vld [vmem:[#allocation8 + $0x2d0] sm:$0xff]
    %v643 = vld [vmem:[#allocation8 + $0x2d8] sm:$0xff]
    %v644 = vld [vmem:[#allocation8 + $0x2e0] sm:$0xff]
    %v645 = vld [vmem:[#allocation8 + $0x2e8] sm:$0xff]
    %v646 = vld [vmem:[#allocation8 + $0x2f0] sm:$0xff]
    %v647 = vld [vmem:[#allocation8 + $0x2f8] sm:$0xff]
    %v648 = vld [vmem:[#allocation8 + $0x300] sm:$0xff]
    %v649 = vld [vmem:[#allocation8 + $0x308] sm:$0xff]
    %v650 = vld [vmem:[#allocation8 + $0x310] sm:$0xff]
    %v651 = vld [vmem:[#allocation8 + $0x318] sm:$0xff]
    %v652 = vld [vmem:[#allocation8 + $0x320] sm:$0xff]
    %v653 = vld [vmem:[#allocation8 + $0x328] sm:$0xff]
    %v654 = vld [vmem:[#allocation8 + $0x330] sm:$0xff]
    %v655 = vld [vmem:[#allocation8 + $0x338] sm:$0xff]
    %v656 = vld [vmem:[#allocation8 + $0x340] sm:$0xff]
    %v657 = vld [vmem:[#allocation8 + $0x348] sm:$0xff]
    %v658 = vld [vmem:[#allocation8 + $0x350] sm:$0xff]
    %v659 = vld [vmem:[#allocation8 + $0x358] sm:$0xff]
    %v660 = vld [vmem:[#allocation8 + $0x360] sm:$0xff]
    %v661 = vld [vmem:[#allocation8 + $0x368] sm:$0xff]
    %v662 = vld [vmem:[#allocation8 + $0x370] sm:$0xff]
    %v663 = vld [vmem:[#allocation8 + $0x378] sm:$0xff]
    %v664 = vld [vmem:[#allocation8 + $0x380] sm:$0xff]
    %v665 = vld [vmem:[#allocation8 + $0x388] sm:$0xff]
    %v666 = vld [vmem:[#allocation8 + $0x390] sm:$0xff]
    %v667 = vld [vmem:[#allocation8 + $0x398] sm:$0xff]
    %v668 = vld [vmem:[#allocation8 + $0x3a0] sm:$0xff]
    %v669 = vld [vmem:[#allocation8 + $0x3a8] sm:$0xff]
    %v670 = vld [vmem:[#allocation8 + $0x3b0] sm:$0xff]
    %v671 = vld [vmem:[#allocation8 + $0x3b8] sm:$0xff]
    %v672 = vld [vmem:[#allocation8 + $0x3c0] sm:$0xff]
    %v673 = vld [vmem:[#allocation8 + $0x3c8] sm:$0xff]
    %v674 = vld [vmem:[#allocation8 + $0x3d0] sm:$0xff]
    %v675 = vld [vmem:[#allocation8 + $0x3d8] sm:$0xff]
    %v676 = vld [vmem:[#allocation8 + $0x3e0] sm:$0xff]
    %v677 = vld [vmem:[#allocation8 + $0x3e8] sm:$0xff]
    %v678 = vld [vmem:[#allocation8 + $0x3f0] sm:$0xff]
    %v679 = vld [vmem:[#allocation8 + $0x3f8] sm:$0xff]
    %v680 = vld [vmem:[#allocation8 + $0x400] sm:$0xff]
    %v681 = vld [vmem:[#allocation8 + $0x408] sm:$0xff]
    %v682 = vld [vmem:[#allocation8 + $0x410] sm:$0xff]
    %v683 = vld [vmem:[#allocation8 + $0x418] sm:$0xff]
    %v684 = vld [vmem:[#allocation8 + $0x420] sm:$0xff]
    %v685 = vld [vmem:[#allocation8 + $0x428] sm:$0xff]
    %v686 = vld [vmem:[#allocation8 + $0x430] sm:$0xff]
    %v687 = vld [vmem:[#allocation8 + $0x438] sm:$0xff]
    %v688 = vld [vmem:[#allocation8 + $0x440] sm:$0xff]
    %v689 = vld [vmem:[#allocation8 + $0x448] sm:$0xff]
    %v690 = vld [vmem:[#allocation8 + $0x450] sm:$0xff]
    %v691 = vld [vmem:[#allocation8 + $0x458] sm:$0xff]
    %v692 = vld [vmem:[#allocation8 + $0x460] sm:$0xff]
    %v693 = vld [vmem:[#allocation8 + $0x468] sm:$0xff]
    %v694 = vld [vmem:[#allocation8 + $0x470] sm:$0xff]
    %v695 = vld [vmem:[#allocation8 + $0x478] sm:$0xff]
    %v696 = vld [vmem:[#allocation8 + $0x480] sm:$0xff]
    %v697 = vld [vmem:[#allocation8 + $0x488] sm:$0xff]
    %v698 = vld [vmem:[#allocation8 + $0x490] sm:$0xff]
    %v699 = vld [vmem:[#allocation8 + $0x498] sm:$0xff]
    %v700 = vld [vmem:[#allocation8 + $0x4a0] sm:$0xff]
    %v701 = vld [vmem:[#allocation8 + $0x4a8] sm:$0xff]
    %v702 = vld [vmem:[#allocation8 + $0x4b0] sm:$0xff]
    %v703 = vld [vmem:[#allocation8 + $0x4b8] sm:$0xff]
    %v704 = vld [vmem:[#allocation8 + $0x4c0] sm:$0xff]
    %v705 = vld [vmem:[#allocation8 + $0x4c8] sm:$0xff]
    %v706 = vld [vmem:[#allocation8 + $0x4d0] sm:$0xff]
    %v707 = vld [vmem:[#allocation8 + $0x4d8] sm:$0xff]
    %v708 = vld [vmem:[#allocation8 + $0x4e0] sm:$0xff]
    %v709 = vld [vmem:[#allocation8 + $0x4e8] sm:$0xff]
    %v710 = vld [vmem:[#allocation8 + $0x4f0] sm:$0xff]
    %v711 = vld [vmem:[#allocation8 + $0x4f8] sm:$0xff]
    %v712 = vld [vmem:[#allocation8 + $0x500] sm:$0xff]
    %v713 = vld [vmem:[#allocation8 + $0x508] sm:$0xff]
    %v714 = vld [vmem:[#allocation8 + $0x510] sm:$0xff]
    %v715 = vld [vmem:[#allocation8 + $0x518] sm:$0xff]
    %v716 = vld [vmem:[#allocation8 + $0x520] sm:$0xff]
    %v717 = vld [vmem:[#allocation8 + $0x528] sm:$0xff]
    %v718 = vld [vmem:[#allocation8 + $0x530] sm:$0xff]
    %v719 = vld [vmem:[#allocation8 + $0x538] sm:$0xff]
    %v720 = vld [vmem:[#allocation8 + $0x540] sm:$0xff]
    %v721 = vld [vmem:[#allocation8 + $0x548] sm:$0xff]
    %v722 = vld [vmem:[#allocation8 + $0x550] sm:$0xff]
    %v723 = vld [vmem:[#allocation8 + $0x558] sm:$0xff]
    %v724 = vld [vmem:[#allocation8 + $0x560] sm:$0xff]
    %v725 = vld [vmem:[#allocation8 + $0x568] sm:$0xff]
    %v726 = vld [vmem:[#allocation8 + $0x570] sm:$0xff]
    %v727 = vld [vmem:[#allocation8 + $0x578] sm:$0xff]
    %v728 = vld [vmem:[#allocation8 + $0x580] sm:$0xff]
    %v729 = vld [vmem:[#allocation8 + $0x588] sm:$0xff]
    %v730 = vld [vmem:[#allocation8 + $0x590] sm:$0xff]
    %v731 = vld [vmem:[#allocation8 + $0x598] sm:$0xff]
    %v732 = vld [vmem:[#allocation8 + $0x5a0] sm:$0xff]
    %v733 = vld [vmem:[#allocation8 + $0x5a8] sm:$0xff]
    %v734 = vld [vmem:[#allocation8 + $0x5b0] sm:$0xff]
    %v735 = vld [vmem:[#allocation8 + $0x5b8] sm:$0xff]
    %v736 = vld [vmem:[#allocation8 + $0x5c0] sm:$0xff]
    %v737 = vld [vmem:[#allocation8 + $0x5c8] sm:$0xff]
    %v738 = vld [vmem:[#allocation8 + $0x5d0] sm:$0xff]
    %v739 = vld [vmem:[#allocation8 + $0x5d8] sm:$0xff]
    %v740 = vld [vmem:[#allocation8 + $0x5e0] sm:$0xff]
    %v741 = vld [vmem:[#allocation8 + $0x5e8] sm:$0xff]
    %v742 = vld [vmem:[#allocation8 + $0x5f0] sm:$0xff]
    %v743 = vld [vmem:[#allocation8 + $0x5f8] sm:$0xff]
    %v744 = vld [vmem:[#allocation10] sm:$0xf]
    %v746 = vperm.slane %v744, 0
    %v747 = vperm.slane %v744, 1
    %v748 = vperm.slane %v744, 2
    %v749 = vperm.slane %v744, 3
    %v946 = vunpack.c.l.b16 %v552
    %v947 = vunpack.c.h.b16 %v552
    %v948 = vunpack.c.l.b16 %v553
    %v949 = vunpack.c.h.b16 %v553
    %v950 = vunpack.c.l.b16 %v554
    %v951 = vunpack.c.h.b16 %v554
    %v952 = vunpack.c.l.b16 %v555
    %v953 = vunpack.c.h.b16 %v555
    %v954 = vunpack.c.l.b16 %v556
    %v955 = vunpack.c.h.b16 %v556
    %v956 = vunpack.c.l.b16 %v557
    %v957 = vunpack.c.h.b16 %v557
    %v958 = vunpack.c.l.b16 %v558
    %v959 = vunpack.c.h.b16 %v558
    %v960 = vunpack.c.l.b16 %v559
    %v961 = vunpack.c.h.b16 %v559
    %v962 = vunpack.c.l.b16 %v560
    %v963 = vunpack.c.h.b16 %v560
    %v964 = vunpack.c.l.b16 %v561
    %v965 = vunpack.c.h.b16 %v561
    %v966 = vunpack.c.l.b16 %v562
    %v967 = vunpack.c.h.b16 %v562
    %v968 = vunpack.c.l.b16 %v563
    %v969 = vunpack.c.h.b16 %v563
    %v970 = vunpack.c.l.b16 %v564
    %v971 = vunpack.c.h.b16 %v564
    %v972 = vunpack.c.l.b16 %v565
    %v973 = vunpack.c.h.b16 %v565
    %v974 = vunpack.c.l.b16 %v566
    %v975 = vunpack.c.h.b16 %v566
    %v976 = vunpack.c.l.b16 %v567
    %v977 = vunpack.c.h.b16 %v567
    %v978 = vunpack.c.l.b16 %v568
    %v979 = vunpack.c.h.b16 %v568
    %v980 = vunpack.c.l.b16 %v569
    %v981 = vunpack.c.h.b16 %v569
    %v982 = vunpack.c.l.b16 %v570
    %v983 = vunpack.c.h.b16 %v570
    %v984 = vunpack.c.l.b16 %v571
    %v985 = vunpack.c.h.b16 %v571
    %v986 = vunpack.c.l.b16 %v572
    %v987 = vunpack.c.h.b16 %v572
    %v988 = vunpack.c.l.b16 %v573
    %v989 = vunpack.c.h.b16 %v573
    %v990 = vunpack.c.l.b16 %v574
    %v991 = vunpack.c.h.b16 %v574
    %v992 = vunpack.c.l.b16 %v575
    %v993 = vunpack.c.h.b16 %v575
    %v994 = vunpack.c.l.b16 %v576
    %v995 = vunpack.c.h.b16 %v576
    %v996 = vunpack.c.l.b16 %v577
    %v997 = vunpack.c.h.b16 %v577
    %v998 = vunpack.c.l.b16 %v578
    %v999 = vunpack.c.h.b16 %v578
    %v1000 = vunpack.c.l.b16 %v579
    %v1001 = vunpack.c.h.b16 %v579
    %v1002 = vunpack.c.l.b16 %v580
    %v1003 = vunpack.c.h.b16 %v580
    %v1004 = vunpack.c.l.b16 %v581
    %v1005 = vunpack.c.h.b16 %v581
    %v1006 = vunpack.c.l.b16 %v582
    %v1007 = vunpack.c.h.b16 %v582
    %v1008 = vunpack.c.l.b16 %v583
    %v1009 = vunpack.c.h.b16 %v583
    %v1010 = vunpack.c.l.b16 %v584
    %v1011 = vunpack.c.h.b16 %v584
    %v1012 = vunpack.c.l.b16 %v585
    %v1013 = vunpack.c.h.b16 %v585
    %v1014 = vunpack.c.l.b16 %v586
    %v1015 = vunpack.c.h.b16 %v586
    %v1016 = vunpack.c.l.b16 %v587
    %v1017 = vunpack.c.h.b16 %v587
    %v1018 = vunpack.c.l.b16 %v588
    %v1019 = vunpack.c.h.b16 %v588
    %v1020 = vunpack.c.l.b16 %v589
    %v1021 = vunpack.c.h.b16 %v589
    %v1022 = vunpack.c.l.b16 %v590
    %v1023 = vunpack.c.h.b16 %v590
    %v1024 = vunpack.c.l.b16 %v591
    %v1025 = vunpack.c.h.b16 %v591
    %v1026 = vunpack.c.l.b16 %v592
    %v1027 = vunpack.c.h.b16 %v592
    %v1028 = vunpack.c.l.b16 %v593
    %v1029 = vunpack.c.h.b16 %v593
    %v1030 = vunpack.c.l.b16 %v594
    %v1031 = vunpack.c.h.b16 %v594
    %v1032 = vunpack.c.l.b16 %v595
    %v1033 = vunpack.c.h.b16 %v595
    %v1034 = vunpack.c.l.b16 %v596
    %v1035 = vunpack.c.h.b16 %v596
    %v1036 = vunpack.c.l.b16 %v597
    %v1037 = vunpack.c.h.b16 %v597
    %v1038 = vunpack.c.l.b16 %v598
    %v1039 = vunpack.c.h.b16 %v598
    %v1040 = vunpack.c.l.b16 %v599
    %v1041 = vunpack.c.h.b16 %v599
    %v1042 = vunpack.c.l.b16 %v600
    %v1043 = vunpack.c.h.b16 %v600
    %v1044 = vunpack.c.l.b16 %v601
    %v1045 = vunpack.c.h.b16 %v601
    %v1046 = vunpack.c.l.b16 %v602
    %v1047 = vunpack.c.h.b16 %v602
    %v1048 = vunpack.c.l.b16 %v603
    %v1049 = vunpack.c.h.b16 %v603
    %v1050 = vunpack.c.l.b16 %v604
    %v1051 = vunpack.c.h.b16 %v604
    %v1052 = vunpack.c.l.b16 %v605
    %v1053 = vunpack.c.h.b16 %v605
    %v1054 = vunpack.c.l.b16 %v606
    %v1055 = vunpack.c.h.b16 %v606
    %v1056 = vunpack.c.l.b16 %v607
    %v1057 = vunpack.c.h.b16 %v607
    %v1058 = vunpack.c.l.b16 %v608
    %v1059 = vunpack.c.h.b16 %v608
    %v1060 = vunpack.c.l.b16 %v609
    %v1061 = vunpack.c.h.b16 %v609
    %v1062 = vunpack.c.l.b16 %v610
    %v1063 = vunpack.c.h.b16 %v610
    %v1064 = vunpack.c.l.b16 %v611
    %v1065 = vunpack.c.h.b16 %v611
    %v1066 = vunpack.c.l.b16 %v612
    %v1067 = vunpack.c.h.b16 %v612
    %v1068 = vunpack.c.l.b16 %v613
    %v1069 = vunpack.c.h.b16 %v613
    %v1070 = vunpack.c.l.b16 %v614
    %v1071 = vunpack.c.h.b16 %v614
    %v1072 = vunpack.c.l.b16 %v615
    %v1073 = vunpack.c.h.b16 %v615
    %v1074 = vunpack.c.l.b16 %v616
    %v1075 = vunpack.c.h.b16 %v616
    %v1076 = vunpack.c.l.b16 %v617
    %v1077 = vunpack.c.h.b16 %v617
    %v1078 = vunpack.c.l.b16 %v618
    %v1079 = vunpack.c.h.b16 %v618
    %v1080 = vunpack.c.l.b16 %v619
    %v1081 = vunpack.c.h.b16 %v619
    %v1082 = vunpack.c.l.b16 %v620
    %v1083 = vunpack.c.h.b16 %v620
    %v1084 = vunpack.c.l.b16 %v621
    %v1085 = vunpack.c.h.b16 %v621
    %v1086 = vunpack.c.l.b16 %v622
    %v1087 = vunpack.c.h.b16 %v622
    %v1088 = vunpack.c.l.b16 %v623
    %v1089 = vunpack.c.h.b16 %v623
    %v1090 = vunpack.c.l.b16 %v624
    %v1091 = vunpack.c.h.b16 %v624
    %v1092 = vunpack.c.l.b16 %v625
    %v1093 = vunpack.c.h.b16 %v625
    %v1094 = vunpack.c.l.b16 %v626
    %v1095 = vunpack.c.h.b16 %v626
    %v1096 = vunpack.c.l.b16 %v627
    %v1097 = vunpack.c.h.b16 %v627
    %v1098 = vunpack.c.l.b16 %v628
    %v1099 = vunpack.c.h.b16 %v628
    %v1100 = vunpack.c.l.b16 %v629
    %v1101 = vunpack.c.h.b16 %v629
    %v1102 = vunpack.c.l.b16 %v630
    %v1103 = vunpack.c.h.b16 %v630
    %v1104 = vunpack.c.l.b16 %v631
    %v1105 = vunpack.c.h.b16 %v631
    %v1106 = vunpack.c.l.b16 %v632
    %v1107 = vunpack.c.h.b16 %v632
    %v1108 = vunpack.c.l.b16 %v633
    %v1109 = vunpack.c.h.b16 %v633
    %v1110 = vunpack.c.l.b16 %v634
    %v1111 = vunpack.c.h.b16 %v634
    %v1112 = vunpack.c.l.b16 %v635
    %v1113 = vunpack.c.h.b16 %v635
    %v1114 = vunpack.c.l.b16 %v636
    %v1115 = vunpack.c.h.b16 %v636
    %v1116 = vunpack.c.l.b16 %v637
    %v1117 = vunpack.c.h.b16 %v637
    %v1118 = vunpack.c.l.b16 %v638
    %v1119 = vunpack.c.h.b16 %v638
    %v1120 = vunpack.c.l.b16 %v639
    %v1121 = vunpack.c.h.b16 %v639
    %v1122 = vunpack.c.l.b16 %v640
    %v1123 = vunpack.c.h.b16 %v640
    %v1124 = vunpack.c.l.b16 %v641
    %v1125 = vunpack.c.h.b16 %v641
    %v1126 = vunpack.c.l.b16 %v642
    %v1127 = vunpack.c.h.b16 %v642
    %v1128 = vunpack.c.l.b16 %v643
    %v1129 = vunpack.c.h.b16 %v643
    %v1130 = vunpack.c.l.b16 %v644
    %v1131 = vunpack.c.h.b16 %v644
    %v1132 = vunpack.c.l.b16 %v645
    %v1133 = vunpack.c.h.b16 %v645
    %v1134 = vunpack.c.l.b16 %v646
    %v1135 = vunpack.c.h.b16 %v646
    %v1136 = vunpack.c.l.b16 %v647
    %v1137 = vunpack.c.h.b16 %v647
    %v1138 = vunpack.c.l.b16 %v648
    %v1139 = vunpack.c.h.b16 %v648
    %v1140 = vunpack.c.l.b16 %v649
    %v1141 = vunpack.c.h.b16 %v649
    %v1142 = vunpack.c.l.b16 %v650
    %v1143 = vunpack.c.h.b16 %v650
    %v1144 = vunpack.c.l.b16 %v651
    %v1145 = vunpack.c.h.b16 %v651
    %v1146 = vunpack.c.l.b16 %v652
    %v1147 = vunpack.c.h.b16 %v652
    %v1148 = vunpack.c.l.b16 %v653
    %v1149 = vunpack.c.h.b16 %v653
    %v1150 = vunpack.c.l.b16 %v654
    %v1151 = vunpack.c.h.b16 %v654
    %v1152 = vunpack.c.l.b16 %v655
    %v1153 = vunpack.c.h.b16 %v655
    %v1154 = vunpack.c.l.b16 %v656
    %v1155 = vunpack.c.h.b16 %v656
    %v1156 = vunpack.c.l.b16 %v657
    %v1157 = vunpack.c.h.b16 %v657
    %v1158 = vunpack.c.l.b16 %v658
    %v1159 = vunpack.c.h.b16 %v658
    %v1160 = vunpack.c.l.b16 %v659
    %v1161 = vunpack.c.h.b16 %v659
    %v1162 = vunpack.c.l.b16 %v660
    %v1163 = vunpack.c.h.b16 %v660
    %v1164 = vunpack.c.l.b16 %v661
    %v1165 = vunpack.c.h.b16 %v661
    %v1166 = vunpack.c.l.b16 %v662
    %v1167 = vunpack.c.h.b16 %v662
    %v1168 = vunpack.c.l.b16 %v663
    %v1169 = vunpack.c.h.b16 %v663
    %v1170 = vunpack.c.l.b16 %v664
    %v1171 = vunpack.c.h.b16 %v664
    %v1172 = vunpack.c.l.b16 %v665
    %v1173 = vunpack.c.h.b16 %v665
    %v1174 = vunpack.c.l.b16 %v666
    %v1175 = vunpack.c.h.b16 %v666
    %v1176 = vunpack.c.l.b16 %v667
    %v1177 = vunpack.c.h.b16 %v667
    %v1178 = vunpack.c.l.b16 %v668
    %v1179 = vunpack.c.h.b16 %v668
    %v1180 = vunpack.c.l.b16 %v669
    %v1181 = vunpack.c.h.b16 %v669
    %v1182 = vunpack.c.l.b16 %v670
    %v1183 = vunpack.c.h.b16 %v670
    %v1184 = vunpack.c.l.b16 %v671
    %v1185 = vunpack.c.h.b16 %v671
    %v1186 = vunpack.c.l.b16 %v672
    %v1187 = vunpack.c.h.b16 %v672
    %v1188 = vunpack.c.l.b16 %v673
    %v1189 = vunpack.c.h.b16 %v673
    %v1190 = vunpack.c.l.b16 %v674
    %v1191 = vunpack.c.h.b16 %v674
    %v1192 = vunpack.c.l.b16 %v675
    %v1193 = vunpack.c.h.b16 %v675
    %v1194 = vunpack.c.l.b16 %v676
    %v1195 = vunpack.c.h.b16 %v676
    %v1196 = vunpack.c.l.b16 %v677
    %v1197 = vunpack.c.h.b16 %v677
    %v1198 = vunpack.c.l.b16 %v678
    %v1199 = vunpack.c.h.b16 %v678
    %v1200 = vunpack.c.l.b16 %v679
    %v1201 = vunpack.c.h.b16 %v679
    %v1202 = vunpack.c.l.b16 %v680
    %v1203 = vunpack.c.h.b16 %v680
    %v1204 = vunpack.c.l.b16 %v681
    %v1205 = vunpack.c.h.b16 %v681
    %v1206 = vunpack.c.l.b16 %v682
    %v1207 = vunpack.c.h.b16 %v682
    %v1208 = vunpack.c.l.b16 %v683
    %v1209 = vunpack.c.h.b16 %v683
    %v1210 = vunpack.c.l.b16 %v684
    %v1211 = vunpack.c.h.b16 %v684
    %v1212 = vunpack.c.l.b16 %v685
    %v1213 = vunpack.c.h.b16 %v685
    %v1214 = vunpack.c.l.b16 %v686
    %v1215 = vunpack.c.h.b16 %v686
    %v1216 = vunpack.c.l.b16 %v687
    %v1217 = vunpack.c.h.b16 %v687
    %v1218 = vunpack.c.l.b16 %v688
    %v1219 = vunpack.c.h.b16 %v688
    %v1220 = vunpack.c.l.b16 %v689
    %v1221 = vunpack.c.h.b16 %v689
    %v1222 = vunpack.c.l.b16 %v690
    %v1223 = vunpack.c.h.b16 %v690
    %v1224 = vunpack.c.l.b16 %v691
    %v1225 = vunpack.c.h.b16 %v691
    %v1226 = vunpack.c.l.b16 %v692
    %v1227 = vunpack.c.h.b16 %v692
    %v1228 = vunpack.c.l.b16 %v693
    %v1229 = vunpack.c.h.b16 %v693
    %v1230 = vunpack.c.l.b16 %v694
    %v1231 = vunpack.c.h.b16 %v694
    %v1232 = vunpack.c.l.b16 %v695
    %v1233 = vunpack.c.h.b16 %v695
    %v1234 = vunpack.c.l.b16 %v696
    %v1235 = vunpack.c.h.b16 %v696
    %v1236 = vunpack.c.l.b16 %v697
    %v1237 = vunpack.c.h.b16 %v697
    %v1238 = vunpack.c.l.b16 %v698
    %v1239 = vunpack.c.h.b16 %v698
    %v1240 = vunpack.c.l.b16 %v699
    %v1241 = vunpack.c.h.b16 %v699
    %v1242 = vunpack.c.l.b16 %v700
    %v1243 = vunpack.c.h.b16 %v700
    %v1244 = vunpack.c.l.b16 %v701
    %v1245 = vunpack.c.h.b16 %v701
    %v1246 = vunpack.c.l.b16 %v702
    %v1247 = vunpack.c.h.b16 %v702
    %v1248 = vunpack.c.l.b16 %v703
    %v1249 = vunpack.c.h.b16 %v703
    %v1250 = vunpack.c.l.b16 %v704
    %v1251 = vunpack.c.h.b16 %v704
    %v1252 = vunpack.c.l.b16 %v705
    %v1253 = vunpack.c.h.b16 %v705
    %v1254 = vunpack.c.l.b16 %v706
    %v1255 = vunpack.c.h.b16 %v706
    %v1256 = vunpack.c.l.b16 %v707
    %v1257 = vunpack.c.h.b16 %v707
    %v1258 = vunpack.c.l.b16 %v708
    %v1259 = vunpack.c.h.b16 %v708
    %v1260 = vunpack.c.l.b16 %v709
    %v1261 = vunpack.c.h.b16 %v709
    %v1262 = vunpack.c.l.b16 %v710
    %v1263 = vunpack.c.h.b16 %v710
    %v1264 = vunpack.c.l.b16 %v711
    %v1265 = vunpack.c.h.b16 %v711
    %v1266 = vunpack.c.l.b16 %v712
    %v1267 = vunpack.c.h.b16 %v712
    %v1268 = vunpack.c.l.b16 %v713
    %v1269 = vunpack.c.h.b16 %v713
    %v1270 = vunpack.c.l.b16 %v714
    %v1271 = vunpack.c.h.b16 %v714
    %v1272 = vunpack.c.l.b16 %v715
    %v1273 = vunpack.c.h.b16 %v715
    %v1274 = vunpack.c.l.b16 %v716
    %v1275 = vunpack.c.h.b16 %v716
    %v1276 = vunpack.c.l.b16 %v717
    %v1277 = vunpack.c.h.b16 %v717
    %v1278 = vunpack.c.l.b16 %v718
    %v1279 = vunpack.c.h.b16 %v718
    %v1280 = vunpack.c.l.b16 %v719
    %v1281 = vunpack.c.h.b16 %v719
    %v1282 = vunpack.c.l.b16 %v720
    %v1283 = vunpack.c.h.b16 %v720
    %v1284 = vunpack.c.l.b16 %v721
    %v1285 = vunpack.c.h.b16 %v721
    %v1286 = vunpack.c.l.b16 %v722
    %v1287 = vunpack.c.h.b16 %v722
    %v1288 = vunpack.c.l.b16 %v723
    %v1289 = vunpack.c.h.b16 %v723
    %v1290 = vunpack.c.l.b16 %v724
    %v1291 = vunpack.c.h.b16 %v724
    %v1292 = vunpack.c.l.b16 %v725
    %v1293 = vunpack.c.h.b16 %v725
    %v1294 = vunpack.c.l.b16 %v726
    %v1295 = vunpack.c.h.b16 %v726
    %v1296 = vunpack.c.l.b16 %v727
    %v1297 = vunpack.c.h.b16 %v727
    %v1298 = vunpack.c.l.b16 %v728
    %v1299 = vunpack.c.h.b16 %v728
    %v1300 = vunpack.c.l.b16 %v729
    %v1301 = vunpack.c.h.b16 %v729
    %v1302 = vunpack.c.l.b16 %v730
    %v1303 = vunpack.c.h.b16 %v730
    %v1304 = vunpack.c.l.b16 %v731
    %v1305 = vunpack.c.h.b16 %v731
    %v1306 = vunpack.c.l.b16 %v732
    %v1307 = vunpack.c.h.b16 %v732
    %v1308 = vunpack.c.l.b16 %v733
    %v1309 = vunpack.c.h.b16 %v733
    %v1310 = vunpack.c.l.b16 %v734
    %v1311 = vunpack.c.h.b16 %v734
    %v1312 = vunpack.c.l.b16 %v735
    %v1313 = vunpack.c.h.b16 %v735
    %v1314 = vunpack.c.l.b16 %v736
    %v1315 = vunpack.c.h.b16 %v736
    %v1316 = vunpack.c.l.b16 %v737
    %v1317 = vunpack.c.h.b16 %v737
    %v1318 = vunpack.c.l.b16 %v738
    %v1319 = vunpack.c.h.b16 %v738
    %v1320 = vunpack.c.l.b16 %v739
    %v1321 = vunpack.c.h.b16 %v739
    %v1322 = vunpack.c.l.b16 %v740
    %v1323 = vunpack.c.h.b16 %v740
    %v1324 = vunpack.c.l.b16 %v741
    %v1325 = vunpack.c.h.b16 %v741
    %v1326 = vunpack.c.l.b16 %v742
    %v1327 = vunpack.c.h.b16 %v742
    %v1328 = vunpack.c.l.b16 %v743
    %v1329 = vunpack.c.h.b16 %v743
    %v1330 = vpack.c.b16 %v950, %v946
    %v1331 = vpack.c.b16 %v951, %v947
    %v1332 = vpack.c.b16 %v952, %v948
    %v1333 = vpack.c.b16 %v953, %v949
    %v1334 = vpack.c.b16 %v958, %v954
    %v1335 = vpack.c.b16 %v959, %v955
    %v1336 = vpack.c.b16 %v960, %v956
    %v1337 = vpack.c.b16 %v961, %v957
    %v1338 = vpack.c.b16 %v966, %v962
    %v1339 = vpack.c.b16 %v967, %v963
    %v1340 = vpack.c.b16 %v968, %v964
    %v1341 = vpack.c.b16 %v969, %v965
    %v1342 = vpack.c.b16 %v974, %v970
    %v1343 = vpack.c.b16 %v975, %v971
    %v1344 = vpack.c.b16 %v976, %v972
    %v1345 = vpack.c.b16 %v977, %v973
    %v1346 = vpack.c.b16 %v982, %v978
    %v1347 = vpack.c.b16 %v983, %v979
    %v1348 = vpack.c.b16 %v984, %v980
    %v1349 = vpack.c.b16 %v985, %v981
    %v1350 = vpack.c.b16 %v990, %v986
    %v1351 = vpack.c.b16 %v991, %v987
    %v1352 = vpack.c.b16 %v992, %v988
    %v1353 = vpack.c.b16 %v993, %v989
    %v1354 = vpack.c.b16 %v998, %v994
    %v1355 = vpack.c.b16 %v999, %v995
    %v1356 = vpack.c.b16 %v1000, %v996
    %v1357 = vpack.c.b16 %v1001, %v997
    %v1358 = vpack.c.b16 %v1006, %v1002
    %v1359 = vpack.c.b16 %v1007, %v1003
    %v1360 = vpack.c.b16 %v1008, %v1004
    %v1361 = vpack.c.b16 %v1009, %v1005
    %v1362 = vpack.c.b16 %v1014, %v1010
    %v1363 = vpack.c.b16 %v1015, %v1011
    %v1364 = vpack.c.b16 %v1016, %v1012
    %v1365 = vpack.c.b16 %v1017, %v1013
    %v1366 = vpack.c.b16 %v1022, %v1018
    %v1367 = vpack.c.b16 %v1023, %v1019
    %v1368 = vpack.c.b16 %v1024, %v1020
    %v1369 = vpack.c.b16 %v1025, %v1021
    %v1370 = vpack.c.b16 %v1030, %v1026
    %v1371 = vpack.c.b16 %v1031, %v1027
    %v1372 = vpack.c.b16 %v1032, %v1028
    %v1373 = vpack.c.b16 %v1033, %v1029
    %v1374 = vpack.c.b16 %v1038, %v1034
    %v1375 = vpack.c.b16 %v1039, %v1035
    %v1376 = vpack.c.b16 %v1040, %v1036
    %v1377 = vpack.c.b16 %v1041, %v1037
    %v1378 = vpack.c.b16 %v1046, %v1042
    %v1379 = vpack.c.b16 %v1047, %v1043
    %v1380 = vpack.c.b16 %v1048, %v1044
    %v1381 = vpack.c.b16 %v1049, %v1045
    %v1382 = vpack.c.b16 %v1054, %v1050
    %v1383 = vpack.c.b16 %v1055, %v1051
    %v1384 = vpack.c.b16 %v1056, %v1052
    %v1385 = vpack.c.b16 %v1057, %v1053
    %v1386 = vpack.c.b16 %v1062, %v1058
    %v1387 = vpack.c.b16 %v1063, %v1059
    %v1388 = vpack.c.b16 %v1064, %v1060
    %v1389 = vpack.c.b16 %v1065, %v1061
    %v1390 = vpack.c.b16 %v1070, %v1066
    %v1391 = vpack.c.b16 %v1071, %v1067
    %v1392 = vpack.c.b16 %v1072, %v1068
    %v1393 = vpack.c.b16 %v1073, %v1069
    %v1394 = vpack.c.b16 %v1078, %v1074
    %v1395 = vpack.c.b16 %v1079, %v1075
    %v1396 = vpack.c.b16 %v1080, %v1076
    %v1397 = vpack.c.b16 %v1081, %v1077
    %v1398 = vpack.c.b16 %v1086, %v1082
    %v1399 = vpack.c.b16 %v1087, %v1083
    %v1400 = vpack.c.b16 %v1088, %v1084
    %v1401 = vpack.c.b16 %v1089, %v1085
    %v1402 = vpack.c.b16 %v1094, %v1090
    %v1403 = vpack.c.b16 %v1095, %v1091
    %v1404 = vpack.c.b16 %v1096, %v1092
    %v1405 = vpack.c.b16 %v1097, %v1093
    %v1406 = vpack.c.b16 %v1102, %v1098
    %v1407 = vpack.c.b16 %v1103, %v1099
    %v1408 = vpack.c.b16 %v1104, %v1100
    %v1409 = vpack.c.b16 %v1105, %v1101
    %v1410 = vpack.c.b16 %v1110, %v1106
    %v1411 = vpack.c.b16 %v1111, %v1107
    %v1412 = vpack.c.b16 %v1112, %v1108
    %v1413 = vpack.c.b16 %v1113, %v1109
    %v1414 = vpack.c.b16 %v1118, %v1114
    %v1415 = vpack.c.b16 %v1119, %v1115
    %v1416 = vpack.c.b16 %v1120, %v1116
    %v1417 = vpack.c.b16 %v1121, %v1117
    %v1418 = vpack.c.b16 %v1126, %v1122
    %v1419 = vpack.c.b16 %v1127, %v1123
    %v1420 = vpack.c.b16 %v1128, %v1124
    %v1421 = vpack.c.b16 %v1129, %v1125
    %v1422 = vpack.c.b16 %v1134, %v1130
    %v1423 = vpack.c.b16 %v1135, %v1131
    %v1424 = vpack.c.b16 %v1136, %v1132
    %v1425 = vpack.c.b16 %v1137, %v1133
    %v1426 = vpack.c.b16 %v1142, %v1138
    %v1427 = vpack.c.b16 %v1143, %v1139
    %v1428 = vpack.c.b16 %v1144, %v1140
    %v1429 = vpack.c.b16 %v1145, %v1141
    %v1430 = vpack.c.b16 %v1150, %v1146
    %v1431 = vpack.c.b16 %v1151, %v1147
    %v1432 = vpack.c.b16 %v1152, %v1148
    %v1433 = vpack.c.b16 %v1153, %v1149
    %v1434 = vpack.c.b16 %v1158, %v1154
    %v1435 = vpack.c.b16 %v1159, %v1155
    %v1436 = vpack.c.b16 %v1160, %v1156
    %v1437 = vpack.c.b16 %v1161, %v1157
    %v1438 = vpack.c.b16 %v1166, %v1162
    %v1439 = vpack.c.b16 %v1167, %v1163
    %v1440 = vpack.c.b16 %v1168, %v1164
    %v1441 = vpack.c.b16 %v1169, %v1165
    %v1442 = vpack.c.b16 %v1174, %v1170
    %v1443 = vpack.c.b16 %v1175, %v1171
    %v1444 = vpack.c.b16 %v1176, %v1172
    %v1445 = vpack.c.b16 %v1177, %v1173
    %v1446 = vpack.c.b16 %v1182, %v1178
    %v1447 = vpack.c.b16 %v1183, %v1179
    %v1448 = vpack.c.b16 %v1184, %v1180
    %v1449 = vpack.c.b16 %v1185, %v1181
    %v1450 = vpack.c.b16 %v1190, %v1186
    %v1451 = vpack.c.b16 %v1191, %v1187
    %v1452 = vpack.c.b16 %v1192, %v1188
    %v1453 = vpack.c.b16 %v1193, %v1189
    %v1454 = vpack.c.b16 %v1198, %v1194
    %v1455 = vpack.c.b16 %v1199, %v1195
    %v1456 = vpack.c.b16 %v1200, %v1196
    %v1457 = vpack.c.b16 %v1201, %v1197
    %v1458 = vpack.c.b16 %v1206, %v1202
    %v1459 = vpack.c.b16 %v1207, %v1203
    %v1460 = vpack.c.b16 %v1208, %v1204
    %v1461 = vpack.c.b16 %v1209, %v1205
    %v1462 = vpack.c.b16 %v1214, %v1210
    %v1463 = vpack.c.b16 %v1215, %v1211
    %v1464 = vpack.c.b16 %v1216, %v1212
    %v1465 = vpack.c.b16 %v1217, %v1213
    %v1466 = vpack.c.b16 %v1222, %v1218
    %v1467 = vpack.c.b16 %v1223, %v1219
    %v1468 = vpack.c.b16 %v1224, %v1220
    %v1469 = vpack.c.b16 %v1225, %v1221
    %v1470 = vpack.c.b16 %v1230, %v1226
    %v1471 = vpack.c.b16 %v1231, %v1227
    %v1472 = vpack.c.b16 %v1232, %v1228
    %v1473 = vpack.c.b16 %v1233, %v1229
    %v1474 = vpack.c.b16 %v1238, %v1234
    %v1475 = vpack.c.b16 %v1239, %v1235
    %v1476 = vpack.c.b16 %v1240, %v1236
    %v1477 = vpack.c.b16 %v1241, %v1237
    %v1478 = vpack.c.b16 %v1246, %v1242
    %v1479 = vpack.c.b16 %v1247, %v1243
    %v1480 = vpack.c.b16 %v1248, %v1244
    %v1481 = vpack.c.b16 %v1249, %v1245
    %v1482 = vpack.c.b16 %v1254, %v1250
    %v1483 = vpack.c.b16 %v1255, %v1251
    %v1484 = vpack.c.b16 %v1256, %v1252
    %v1485 = vpack.c.b16 %v1257, %v1253
    %v1486 = vpack.c.b16 %v1262, %v1258
    %v1487 = vpack.c.b16 %v1263, %v1259
    %v1488 = vpack.c.b16 %v1264, %v1260
    %v1489 = vpack.c.b16 %v1265, %v1261
    %v1490 = vpack.c.b16 %v1270, %v1266
    %v1491 = vpack.c.b16 %v1271, %v1267
    %v1492 = vpack.c.b16 %v1272, %v1268
    %v1493 = vpack.c.b16 %v1273, %v1269
    %v1494 = vpack.c.b16 %v1278, %v1274
    %v1495 = vpack.c.b16 %v1279, %v1275
    %v1496 = vpack.c.b16 %v1280, %v1276
    %v1497 = vpack.c.b16 %v1281, %v1277
    %v1498 = vpack.c.b16 %v1286, %v1282
    %v1499 = vpack.c.b16 %v1287, %v1283
    %v1500 = vpack.c.b16 %v1288, %v1284
    %v1501 = vpack.c.b16 %v1289, %v1285
    %v1502 = vpack.c.b16 %v1294, %v1290
    %v1503 = vpack.c.b16 %v1295, %v1291
    %v1504 = vpack.c.b16 %v1296, %v1292
    %v1505 = vpack.c.b16 %v1297, %v1293
    %v1506 = vpack.c.b16 %v1302, %v1298
    %v1507 = vpack.c.b16 %v1303, %v1299
    %v1508 = vpack.c.b16 %v1304, %v1300
    %v1509 = vpack.c.b16 %v1305, %v1301
    %v1510 = vpack.c.b16 %v1310, %v1306
    %v1511 = vpack.c.b16 %v1311, %v1307
    %v1512 = vpack.c.b16 %v1312, %v1308
    %v1513 = vpack.c.b16 %v1313, %v1309
    %v1514 = vpack.c.b16 %v1318, %v1314
    %v1515 = vpack.c.b16 %v1319, %v1315
    %v1516 = vpack.c.b16 %v1320, %v1316
    %v1517 = vpack.c.b16 %v1321, %v1317
    %v1518 = vpack.c.b16 %v1326, %v1322
    %v1519 = vpack.c.b16 %v1327, %v1323
    %v1520 = vpack.c.b16 %v1328, %v1324
    %v1521 = vpack.c.b16 %v1329, %v1325
    %1714 = vmatpush.bf16.msra.mxu0 %v1358
    %1715 = vmatpush.bf16.msra.mxu0 %v1354
    %1716 = vmatpush.bf16.msra.mxu0 %v1350
    %1717 = vmatpush.bf16.msra.mxu0 %v1346
    %1718 = vmatpush.bf16.msra.mxu0 %v1342
    %1719 = vmatpush.bf16.msra.mxu0 %v1338
    %1720 = vmatpush.bf16.msra.mxu0 %v1334
    %1721 = vmatpush.bf16.msra.mxu0 %v1330
    %1722 = vmatmul.bf16.gmra.mxu0 %v546
    %v1723 = vpop.f32.mrf.mxu0
    %v1724 = vadd.f32 %v746, %v1723
    %v1725 = vpop.f32.mrf.mxu0
    %1726 = vdwg.mxu0
    %1727 = vmatpush.bf16.msra.mxu0 %v1390
    %1728 = vmatpush.bf16.msra.mxu0 %v1386
    %1729 = vmatpush.bf16.msra.mxu0 %v1382
    %1730 = vmatpush.bf16.msra.mxu0 %v1378
    %1731 = vmatpush.bf16.msra.mxu0 %v1374
    %1732 = vmatpush.bf16.msra.mxu0 %v1370
    %1733 = vmatpush.bf16.msra.mxu0 %v1366
    %1734 = vmatpush.bf16.msra.mxu0 %v1362
    %1735 = vmatmul.bf16.gmra.mxu0 %v547
    %v1736 = vpop.f32.mrf.mxu0
    %v1737 = vadd.f32 %v1724, %v1736
    %v1738 = vpop.f32.mrf.mxu0
    %1739 = vdwg.mxu0
    %1740 = vmatpush.bf16.msra.mxu0 %v1422
    %1741 = vmatpush.bf16.msra.mxu0 %v1418
    %1742 = vmatpush.bf16.msra.mxu0 %v1414
    %1743 = vmatpush.bf16.msra.mxu0 %v1410
    %1744 = vmatpush.bf16.msra.mxu0 %v1406
    %1745 = vmatpush.bf16.msra.mxu0 %v1402
    %1746 = vmatpush.bf16.msra.mxu0 %v1398
    %1747 = vmatpush.bf16.msra.mxu0 %v1394
    %1748 = vmatmul.bf16.gmra.mxu0 %v548
    %v1749 = vpop.f32.mrf.mxu0
    %v1750 = vadd.f32 %v1737, %v1749
    %v1751 = vpop.f32.mrf.mxu0
    %1752 = vdwg.mxu0
    %1753 = vmatpush.bf16.msra.mxu0 %v1454
    %1754 = vmatpush.bf16.msra.mxu0 %v1450
    %1755 = vmatpush.bf16.msra.mxu0 %v1446
    %1756 = vmatpush.bf16.msra.mxu0 %v1442
    %1757 = vmatpush.bf16.msra.mxu0 %v1438
    %1758 = vmatpush.bf16.msra.mxu0 %v1434
    %1759 = vmatpush.bf16.msra.mxu0 %v1430
    %1760 = vmatpush.bf16.msra.mxu0 %v1426
    %1761 = vmatmul.bf16.gmra.mxu0 %v549
    %v1762 = vpop.f32.mrf.mxu0
    %v1763 = vadd.f32 %v1750, %v1762
    %v1764 = vpop.f32.mrf.mxu0
    %1765 = vdwg.mxu0
    %1766 = vmatpush.bf16.msra.mxu0 %v1486
    %1767 = vmatpush.bf16.msra.mxu0 %v1482
    %1768 = vmatpush.bf16.msra.mxu0 %v1478
    %1769 = vmatpush.bf16.msra.mxu0 %v1474
    %1770 = vmatpush.bf16.msra.mxu0 %v1470
    %1771 = vmatpush.bf16.msra.mxu0 %v1466
    %1772 = vmatpush.bf16.msra.mxu0 %v1462
    %1773 = vmatpush.bf16.msra.mxu0 %v1458
    %1774 = vmatmul.bf16.gmra.mxu0 %v550
    %v1775 = vpop.f32.mrf.mxu0
    %v1776 = vadd.f32 %v1763, %v1775
    %v1777 = vpop.f32.mrf.mxu0
    %1778 = vdwg.mxu0
    %1779 = vmatpush.bf16.msra.mxu0 %v1518
    %1780 = vmatpush.bf16.msra.mxu0 %v1514
    %1781 = vmatpush.bf16.msra.mxu0 %v1510
    %1782 = vmatpush.bf16.msra.mxu0 %v1506
    %1783 = vmatpush.bf16.msra.mxu0 %v1502
    %1784 = vmatpush.bf16.msra.mxu0 %v1498
    %1785 = vmatpush.bf16.msra.mxu0 %v1494
    %1786 = vmatpush.bf16.msra.mxu0 %v1490
    %1787 = vmatmul.bf16.gmra.mxu0 %v551
    %v1788 = vpop.f32.mrf.mxu0
    %v1789 = vadd.f32 %v1776, %v1788
    %v1790 = vpop.f32.mrf.mxu0
    %1791 = vdwg.mxu0
    %1792 = vmatpush.bf16.msra.mxu0 %v1359
    %1793 = vmatpush.bf16.msra.mxu0 %v1355
    %1794 = vmatpush.bf16.msra.mxu0 %v1351
    %1795 = vmatpush.bf16.msra.mxu0 %v1347
    %1796 = vmatpush.bf16.msra.mxu0 %v1343
    %1797 = vmatpush.bf16.msra.mxu0 %v1339
    %1798 = vmatpush.bf16.msra.mxu0 %v1335
    %1799 = vmatpush.bf16.msra.mxu0 %v1331
    %1800 = vmatmul.bf16.gmra.mxu0 %v546
    %v1801 = vpop.f32.mrf.mxu0
    %v1802 = vadd.f32 %v747, %v1801
    %v1803 = vpop.f32.mrf.mxu0
    %1804 = vdwg.mxu0
    %1805 = vmatpush.bf16.msra.mxu0 %v1391
    %1806 = vmatpush.bf16.msra.mxu0 %v1387
    %1807 = vmatpush.bf16.msra.mxu0 %v1383
    %1808 = vmatpush.bf16.msra.mxu0 %v1379
    %1809 = vmatpush.bf16.msra.mxu0 %v1375
    %1810 = vmatpush.bf16.msra.mxu0 %v1371
    %1811 = vmatpush.bf16.msra.mxu0 %v1367
    %1812 = vmatpush.bf16.msra.mxu0 %v1363
    %1813 = vmatmul.bf16.gmra.mxu0 %v547
    %v1814 = vpop.f32.mrf.mxu0
    %v1815 = vadd.f32 %v1802, %v1814
    %v1816 = vpop.f32.mrf.mxu0
    %1817 = vdwg.mxu0
    %1818 = vmatpush.bf16.msra.mxu0 %v1423
    %1819 = vmatpush.bf16.msra.mxu0 %v1419
    %1820 = vmatpush.bf16.msra.mxu0 %v1415
    %1821 = vmatpush.bf16.msra.mxu0 %v1411
    %1822 = vmatpush.bf16.msra.mxu0 %v1407
    %1823 = vmatpush.bf16.msra.mxu0 %v1403
    %1824 = vmatpush.bf16.msra.mxu0 %v1399
    %1825 = vmatpush.bf16.msra.mxu0 %v1395
    %1826 = vmatmul.bf16.gmra.mxu0 %v548
    %v1827 = vpop.f32.mrf.mxu0
    %v1828 = vadd.f32 %v1815, %v1827
    %v1829 = vpop.f32.mrf.mxu0
    %1830 = vdwg.mxu0
    %1831 = vmatpush.bf16.msra.mxu0 %v1455
    %1832 = vmatpush.bf16.msra.mxu0 %v1451
    %1833 = vmatpush.bf16.msra.mxu0 %v1447
    %1834 = vmatpush.bf16.msra.mxu0 %v1443
    %1835 = vmatpush.bf16.msra.mxu0 %v1439
    %1836 = vmatpush.bf16.msra.mxu0 %v1435
    %1837 = vmatpush.bf16.msra.mxu0 %v1431
    %1838 = vmatpush.bf16.msra.mxu0 %v1427
    %1839 = vmatmul.bf16.gmra.mxu0 %v549
    %v1840 = vpop.f32.mrf.mxu0
    %v1841 = vadd.f32 %v1828, %v1840
    %v1842 = vpop.f32.mrf.mxu0
    %1843 = vdwg.mxu0
    %1844 = vmatpush.bf16.msra.mxu0 %v1487
    %1845 = vmatpush.bf16.msra.mxu0 %v1483
    %1846 = vmatpush.bf16.msra.mxu0 %v1479
    %1847 = vmatpush.bf16.msra.mxu0 %v1475
    %1848 = vmatpush.bf16.msra.mxu0 %v1471
    %1849 = vmatpush.bf16.msra.mxu0 %v1467
    %1850 = vmatpush.bf16.msra.mxu0 %v1463
    %1851 = vmatpush.bf16.msra.mxu0 %v1459
    %1852 = vmatmul.bf16.gmra.mxu0 %v550
    %v1853 = vpop.f32.mrf.mxu0
    %v1854 = vadd.f32 %v1841, %v1853
    %v1855 = vpop.f32.mrf.mxu0
    %1856 = vdwg.mxu0
    %1857 = vmatpush.bf16.msra.mxu0 %v1519
    %1858 = vmatpush.bf16.msra.mxu0 %v1515
    %1859 = vmatpush.bf16.msra.mxu0 %v1511
    %1860 = vmatpush.bf16.msra.mxu0 %v1507
    %1861 = vmatpush.bf16.msra.mxu0 %v1503
    %1862 = vmatpush.bf16.msra.mxu0 %v1499
    %1863 = vmatpush.bf16.msra.mxu0 %v1495
    %1864 = vmatpush.bf16.msra.mxu0 %v1491
    %1865 = vmatmul.bf16.gmra.mxu0 %v551
    %v1866 = vpop.f32.mrf.mxu0
    %v1867 = vadd.f32 %v1854, %v1866
    %v1868 = vpop.f32.mrf.mxu0
    %1869 = vdwg.mxu0
    %1870 = vmatpush.bf16.msra.mxu0 %v1360
    %1871 = vmatpush.bf16.msra.mxu0 %v1356
    %1872 = vmatpush.bf16.msra.mxu0 %v1352
    %1873 = vmatpush.bf16.msra.mxu0 %v1348
    %1874 = vmatpush.bf16.msra.mxu0 %v1344
    %1875 = vmatpush.bf16.msra.mxu0 %v1340
    %1876 = vmatpush.bf16.msra.mxu0 %v1336
    %1877 = vmatpush.bf16.msra.mxu0 %v1332
    %1878 = vmatmul.bf16.gmra.mxu0 %v546
    %v1879 = vpop.f32.mrf.mxu0
    %v1880 = vadd.f32 %v748, %v1879
    %v1881 = vpop.f32.mrf.mxu0
    %1882 = vdwg.mxu0
    %1883 = vmatpush.bf16.msra.mxu0 %v1392
    %1884 = vmatpush.bf16.msra.mxu0 %v1388
    %1885 = vmatpush.bf16.msra.mxu0 %v1384
    %1886 = vmatpush.bf16.msra.mxu0 %v1380
    %1887 = vmatpush.bf16.msra.mxu0 %v1376
    %1888 = vmatpush.bf16.msra.mxu0 %v1372
    %1889 = vmatpush.bf16.msra.mxu0 %v1368
    %1890 = vmatpush.bf16.msra.mxu0 %v1364
    %1891 = vmatmul.bf16.gmra.mxu0 %v547
    %v1892 = vpop.f32.mrf.mxu0
    %v1893 = vadd.f32 %v1880, %v1892
    %v1894 = vpop.f32.mrf.mxu0
    %1895 = vdwg.mxu0
    %1896 = vmatpush.bf16.msra.mxu0 %v1424
    %1897 = vmatpush.bf16.msra.mxu0 %v1420
    %1898 = vmatpush.bf16.msra.mxu0 %v1416
    %1899 = vmatpush.bf16.msra.mxu0 %v1412
    %1900 = vmatpush.bf16.msra.mxu0 %v1408
    %1901 = vmatpush.bf16.msra.mxu0 %v1404
    %1902 = vmatpush.bf16.msra.mxu0 %v1400
    %1903 = vmatpush.bf16.msra.mxu0 %v1396
    %1904 = vmatmul.bf16.gmra.mxu0 %v548
    %v1905 = vpop.f32.mrf.mxu0
    %v1906 = vadd.f32 %v1893, %v1905
    %v1907 = vpop.f32.mrf.mxu0
    %1908 = vdwg.mxu0
    %1909 = vmatpush.bf16.msra.mxu0 %v1456
    %1910 = vmatpush.bf16.msra.mxu0 %v1452
    %1911 = vmatpush.bf16.msra.mxu0 %v1448
    %1912 = vmatpush.bf16.msra.mxu0 %v1444
    %1913 = vmatpush.bf16.msra.mxu0 %v1440
    %1914 = vmatpush.bf16.msra.mxu0 %v1436
    %1915 = vmatpush.bf16.msra.mxu0 %v1432
    %1916 = vmatpush.bf16.msra.mxu0 %v1428
    %1917 = vmatmul.bf16.gmra.mxu0 %v549
    %v1918 = vpop.f32.mrf.mxu0
    %v1919 = vadd.f32 %v1906, %v1918
    %v1920 = vpop.f32.mrf.mxu0
    %1921 = vdwg.mxu0
    %1922 = vmatpush.bf16.msra.mxu0 %v1488
    %1923 = vmatpush.bf16.msra.mxu0 %v1484
    %1924 = vmatpush.bf16.msra.mxu0 %v1480
    %1925 = vmatpush.bf16.msra.mxu0 %v1476
    %1926 = vmatpush.bf16.msra.mxu0 %v1472
    %1927 = vmatpush.bf16.msra.mxu0 %v1468
    %1928 = vmatpush.bf16.msra.mxu0 %v1464
    %1929 = vmatpush.bf16.msra.mxu0 %v1460
    %1930 = vmatmul.bf16.gmra.mxu0 %v550
    %v1931 = vpop.f32.mrf.mxu0
    %v1932 = vadd.f32 %v1919, %v1931
    %v1933 = vpop.f32.mrf.mxu0
    %1934 = vdwg.mxu0
    %1935 = vmatpush.bf16.msra.mxu0 %v1520
    %1936 = vmatpush.bf16.msra.mxu0 %v1516
    %1937 = vmatpush.bf16.msra.mxu0 %v1512
    %1938 = vmatpush.bf16.msra.mxu0 %v1508
    %1939 = vmatpush.bf16.msra.mxu0 %v1504
    %1940 = vmatpush.bf16.msra.mxu0 %v1500
    %1941 = vmatpush.bf16.msra.mxu0 %v1496
    %1942 = vmatpush.bf16.msra.mxu0 %v1492
    %1943 = vmatmul.bf16.gmra.mxu0 %v551
    %v1944 = vpop.f32.mrf.mxu0
    %v1945 = vadd.f32 %v1932, %v1944
    %v1946 = vpop.f32.mrf.mxu0
    %1947 = vdwg.mxu0
    %1948 = vmatpush.bf16.msra.mxu0 %v1361
    %1949 = vmatpush.bf16.msra.mxu0 %v1357
    %1950 = vmatpush.bf16.msra.mxu0 %v1353
    %1951 = vmatpush.bf16.msra.mxu0 %v1349
    %1952 = vmatpush.bf16.msra.mxu0 %v1345
    %1953 = vmatpush.bf16.msra.mxu0 %v1341
    %1954 = vmatpush.bf16.msra.mxu0 %v1337
    %1955 = vmatpush.bf16.msra.mxu0 %v1333
    %1956 = vmatmul.bf16.gmra.mxu0 %v546
    %v1957 = vpop.f32.mrf.mxu0
    %v1958 = vadd.f32 %v749, %v1957
    %v1959 = vpop.f32.mrf.mxu0
    %1960 = vdwg.mxu0
    %1961 = vmatpush.bf16.msra.mxu0 %v1393
    %1962 = vmatpush.bf16.msra.mxu0 %v1389
    %1963 = vmatpush.bf16.msra.mxu0 %v1385
    %1964 = vmatpush.bf16.msra.mxu0 %v1381
    %1965 = vmatpush.bf16.msra.mxu0 %v1377
    %1966 = vmatpush.bf16.msra.mxu0 %v1373
    %1967 = vmatpush.bf16.msra.mxu0 %v1369
    %1968 = vmatpush.bf16.msra.mxu0 %v1365
    %1969 = vmatmul.bf16.gmra.mxu0 %v547
    %v1970 = vpop.f32.mrf.mxu0
    %v1971 = vadd.f32 %v1958, %v1970
    %v1972 = vpop.f32.mrf.mxu0
    %1973 = vdwg.mxu0
    %1974 = vmatpush.bf16.msra.mxu0 %v1425
    %1975 = vmatpush.bf16.msra.mxu0 %v1421
    %1976 = vmatpush.bf16.msra.mxu0 %v1417
    %1977 = vmatpush.bf16.msra.mxu0 %v1413
    %1978 = vmatpush.bf16.msra.mxu0 %v1409
    %1979 = vmatpush.bf16.msra.mxu0 %v1405
    %1980 = vmatpush.bf16.msra.mxu0 %v1401
    %1981 = vmatpush.bf16.msra.mxu0 %v1397
    %1982 = vmatmul.bf16.gmra.mxu0 %v548
    %v1983 = vpop.f32.mrf.mxu0
    %v1984 = vadd.f32 %v1971, %v1983
    %v1985 = vpop.f32.mrf.mxu0
    %1986 = vdwg.mxu0
    %1987 = vmatpush.bf16.msra.mxu0 %v1457
    %1988 = vmatpush.bf16.msra.mxu0 %v1453
    %1989 = vmatpush.bf16.msra.mxu0 %v1449
    %1990 = vmatpush.bf16.msra.mxu0 %v1445
    %1991 = vmatpush.bf16.msra.mxu0 %v1441
    %1992 = vmatpush.bf16.msra.mxu0 %v1437
    %1993 = vmatpush.bf16.msra.mxu0 %v1433
    %1994 = vmatpush.bf16.msra.mxu0 %v1429
    %1995 = vmatmul.bf16.gmra.mxu0 %v549
    %v1996 = vpop.f32.mrf.mxu0
    %v1997 = vadd.f32 %v1984, %v1996
    %v1998 = vpop.f32.mrf.mxu0
    %1999 = vdwg.mxu0
    %2000 = vmatpush.bf16.msra.mxu0 %v1489
    %2001 = vmatpush.bf16.msra.mxu0 %v1485
    %2002 = vmatpush.bf16.msra.mxu0 %v1481
    %2003 = vmatpush.bf16.msra.mxu0 %v1477
    %2004 = vmatpush.bf16.msra.mxu0 %v1473
    %2005 = vmatpush.bf16.msra.mxu0 %v1469
    %2006 = vmatpush.bf16.msra.mxu0 %v1465
    %2007 = vmatpush.bf16.msra.mxu0 %v1461
    %2008 = vmatmul.bf16.gmra.mxu0 %v550
    %v2009 = vpop.f32.mrf.mxu0
    %v2010 = vadd.f32 %v1997, %v2009
    %v2011 = vpop.f32.mrf.mxu0
    %2012 = vdwg.mxu0
    %2013 = vmatpush.bf16.msra.mxu0 %v1521
    %2014 = vmatpush.bf16.msra.mxu0 %v1517
    %2015 = vmatpush.bf16.msra.mxu0 %v1513
    %2016 = vmatpush.bf16.msra.mxu0 %v1509
    %2017 = vmatpush.bf16.msra.mxu0 %v1505
    %2018 = vmatpush.bf16.msra.mxu0 %v1501
    %2019 = vmatpush.bf16.msra.mxu0 %v1497
    %2020 = vmatpush.bf16.msra.mxu0 %v1493
    %2021 = vmatmul.bf16.gmra.mxu0 %v551
    %v2022 = vpop.f32.mrf.mxu0
    %v2023 = vadd.f32 %v2010, %v2022
    %v2024 = vpop.f32.mrf.mxu0
    %2025 = vdwg.mxu0
    %v2026 = vmax.f32 %v1789, 0.0
    %v2027 = vmax.f32 %v1867, 0.0
    %v2028 = vmax.f32 %v1945, 0.0
    %v2029 = vmax.f32 %v2023, 0.0
    %v2030 = vpack.c.bf16 %v2026, %v2026
    %v2031 = vpack.c.bf16 %v2027, %v2027
    %v2032 = vpack.c.bf16 %v2028, %v2028
    %v2033 = vpack.c.bf16 %v2029, %v2029
    %v2034 = vld [vmem:[#allocation11] sm:$0xff]
    %v2035 = vld [vmem:[#allocation11 + $0x8] sm:$0xff]
    %v2036 = vld [vmem:[#allocation11 + $0x10] sm:$0xff]
    %v2037 = vld [vmem:[#allocation11 + $0x18] sm:$0xff]
    %v2038 = vld [vmem:[#allocation11 + $0x20] sm:$0xff]
    %v2039 = vld [vmem:[#allocation11 + $0x28] sm:$0xff]
    %v2040 = vld [vmem:[#allocation11 + $0x30] sm:$0xff]
    %v2041 = vld [vmem:[#allocation11 + $0x38] sm:$0xff]
    %v2042 = vld [vmem:[#allocation11 + $0x40] sm:$0xff]
    %v2043 = vld [vmem:[#allocation11 + $0x48] sm:$0xff]
    %v2044 = vld [vmem:[#allocation11 + $0x50] sm:$0xff]
    %v2045 = vld [vmem:[#allocation11 + $0x58] sm:$0xff]
    %v2046 = vld [vmem:[#allocation11 + $0x60] sm:$0xff]
    %v2047 = vld [vmem:[#allocation11 + $0x68] sm:$0xff]
    %v2048 = vld [vmem:[#allocation11 + $0x70] sm:$0xff]
    %v2049 = vld [vmem:[#allocation11 + $0x78] sm:$0xff]
    %v2050 = vld [vmem:[#allocation11 + $0x80] sm:$0xff]
    %v2051 = vld [vmem:[#allocation11 + $0x88] sm:$0xff]
    %v2052 = vld [vmem:[#allocation11 + $0x90] sm:$0xff]
    %v2053 = vld [vmem:[#allocation11 + $0x98] sm:$0xff]
    %v2054 = vld [vmem:[#allocation11 + $0xa0] sm:$0xff]
    %v2055 = vld [vmem:[#allocation11 + $0xa8] sm:$0xff]
    %v2056 = vld [vmem:[#allocation11 + $0xb0] sm:$0xff]
    %v2057 = vld [vmem:[#allocation11 + $0xb8] sm:$0xff]
    %v2058 = vld [vmem:[#allocation11 + $0xc0] sm:$0xff]
    %v2059 = vld [vmem:[#allocation11 + $0xc8] sm:$0xff]
    %v2060 = vld [vmem:[#allocation11 + $0xd0] sm:$0xff]
    %v2061 = vld [vmem:[#allocation11 + $0xd8] sm:$0xff]
    %v2062 = vld [vmem:[#allocation11 + $0xe0] sm:$0xff]
    %v2063 = vld [vmem:[#allocation11 + $0xe8] sm:$0xff]
    %v2064 = vld [vmem:[#allocation11 + $0xf0] sm:$0xff]
    %v2065 = vld [vmem:[#allocation11 + $0xf8] sm:$0xff]
    %v2066 = vld [vmem:[#allocation11 + $0x100] sm:$0xff]
    %v2067 = vld [vmem:[#allocation11 + $0x108] sm:$0xff]
    %v2068 = vld [vmem:[#allocation11 + $0x110] sm:$0xff]
    %v2069 = vld [vmem:[#allocation11 + $0x118] sm:$0xff]
    %v2070 = vld [vmem:[#allocation11 + $0x120] sm:$0xff]
    %v2071 = vld [vmem:[#allocation11 + $0x128] sm:$0xff]
    %v2072 = vld [vmem:[#allocation11 + $0x130] sm:$0xff]
    %v2073 = vld [vmem:[#allocation11 + $0x138] sm:$0xff]
    %v2074 = vld [vmem:[#allocation11 + $0x140] sm:$0xff]
    %v2075 = vld [vmem:[#allocation11 + $0x148] sm:$0xff]
    %v2076 = vld [vmem:[#allocation11 + $0x150] sm:$0xff]
    %v2077 = vld [vmem:[#allocation11 + $0x158] sm:$0xff]
    %v2078 = vld [vmem:[#allocation11 + $0x160] sm:$0xff]
    %v2079 = vld [vmem:[#allocation11 + $0x168] sm:$0xff]
    %v2080 = vld [vmem:[#allocation11 + $0x170] sm:$0xff]
    %v2081 = vld [vmem:[#allocation11 + $0x178] sm:$0xff]
    %v2082 = vld [vmem:[#allocation11 + $0x180] sm:$0xff]
    %v2083 = vld [vmem:[#allocation11 + $0x188] sm:$0xff]
    %v2084 = vld [vmem:[#allocation11 + $0x190] sm:$0xff]
    %v2085 = vld [vmem:[#allocation11 + $0x198] sm:$0xff]
    %v2086 = vld [vmem:[#allocation11 + $0x1a0] sm:$0xff]
    %v2087 = vld [vmem:[#allocation11 + $0x1a8] sm:$0xff]
    %v2088 = vld [vmem:[#allocation11 + $0x1b0] sm:$0xff]
    %v2089 = vld [vmem:[#allocation11 + $0x1b8] sm:$0xff]
    %v2090 = vld [vmem:[#allocation11 + $0x1c0] sm:$0xff]
    %v2091 = vld [vmem:[#allocation11 + $0x1c8] sm:$0xff]
    %v2092 = vld [vmem:[#allocation11 + $0x1d0] sm:$0xff]
    %v2093 = vld [vmem:[#allocation11 + $0x1d8] sm:$0xff]
    %v2094 = vld [vmem:[#allocation11 + $0x1e0] sm:$0xff]
    %v2095 = vld [vmem:[#allocation11 + $0x1e8] sm:$0xff]
    %v2096 = vld [vmem:[#allocation11 + $0x1f0] sm:$0xff]
    %v2097 = vld [vmem:[#allocation11 + $0x1f8] sm:$0xff]
    %v2098 = vld [vmem:[%s6] sm:$0x3]
    %v2100 = vperm.slane %v2098, 0
    %v2101 = vperm.slane %v2098, 1
    %v2168 = vunpack.c.l.b16 %v2034
    %v2169 = vunpack.c.h.b16 %v2034
    %v2170 = vunpack.c.l.b16 %v2035
    %v2171 = vunpack.c.h.b16 %v2035
    %v2172 = vunpack.c.l.b16 %v2036
    %v2173 = vunpack.c.h.b16 %v2036
    %v2174 = vunpack.c.l.b16 %v2037
    %v2175 = vunpack.c.h.b16 %v2037
    %v2176 = vunpack.c.l.b16 %v2038
    %v2177 = vunpack.c.h.b16 %v2038
    %v2178 = vunpack.c.l.b16 %v2039
    %v2179 = vunpack.c.h.b16 %v2039
    %v2180 = vunpack.c.l.b16 %v2040
    %v2181 = vunpack.c.h.b16 %v2040
    %v2182 = vunpack.c.l.b16 %v2041
    %v2183 = vunpack.c.h.b16 %v2041
    %v2184 = vunpack.c.l.b16 %v2042
    %v2185 = vunpack.c.h.b16 %v2042
    %v2186 = vunpack.c.l.b16 %v2043
    %v2187 = vunpack.c.h.b16 %v2043
    %v2188 = vunpack.c.l.b16 %v2044
    %v2189 = vunpack.c.h.b16 %v2044
    %v2190 = vunpack.c.l.b16 %v2045
    %v2191 = vunpack.c.h.b16 %v2045
    %v2192 = vunpack.c.l.b16 %v2046
    %v2193 = vunpack.c.h.b16 %v2046
    %v2194 = vunpack.c.l.b16 %v2047
    %v2195 = vunpack.c.h.b16 %v2047
    %v2196 = vunpack.c.l.b16 %v2048
    %v2197 = vunpack.c.h.b16 %v2048
    %v2198 = vunpack.c.l.b16 %v2049
    %v2199 = vunpack.c.h.b16 %v2049
    %v2200 = vunpack.c.l.b16 %v2050
    %v2201 = vunpack.c.h.b16 %v2050
    %v2202 = vunpack.c.l.b16 %v2051
    %v2203 = vunpack.c.h.b16 %v2051
    %v2204 = vunpack.c.l.b16 %v2052
    %v2205 = vunpack.c.h.b16 %v2052
    %v2206 = vunpack.c.l.b16 %v2053
    %v2207 = vunpack.c.h.b16 %v2053
    %v2208 = vunpack.c.l.b16 %v2054
    %v2209 = vunpack.c.h.b16 %v2054
    %v2210 = vunpack.c.l.b16 %v2055
    %v2211 = vunpack.c.h.b16 %v2055
    %v2212 = vunpack.c.l.b16 %v2056
    %v2213 = vunpack.c.h.b16 %v2056
    %v2214 = vunpack.c.l.b16 %v2057
    %v2215 = vunpack.c.h.b16 %v2057
    %v2216 = vunpack.c.l.b16 %v2058
    %v2217 = vunpack.c.h.b16 %v2058
    %v2218 = vunpack.c.l.b16 %v2059
    %v2219 = vunpack.c.h.b16 %v2059
    %v2220 = vunpack.c.l.b16 %v2060
    %v2221 = vunpack.c.h.b16 %v2060
    %v2222 = vunpack.c.l.b16 %v2061
    %v2223 = vunpack.c.h.b16 %v2061
    %v2224 = vunpack.c.l.b16 %v2062
    %v2225 = vunpack.c.h.b16 %v2062
    %v2226 = vunpack.c.l.b16 %v2063
    %v2227 = vunpack.c.h.b16 %v2063
    %v2228 = vunpack.c.l.b16 %v2064
    %v2229 = vunpack.c.h.b16 %v2064
    %v2230 = vunpack.c.l.b16 %v2065
    %v2231 = vunpack.c.h.b16 %v2065
    %v2232 = vunpack.c.l.b16 %v2066
    %v2233 = vunpack.c.h.b16 %v2066
    %v2234 = vunpack.c.l.b16 %v2067
    %v2235 = vunpack.c.h.b16 %v2067
    %v2236 = vunpack.c.l.b16 %v2068
    %v2237 = vunpack.c.h.b16 %v2068
    %v2238 = vunpack.c.l.b16 %v2069
    %v2239 = vunpack.c.h.b16 %v2069
    %v2240 = vunpack.c.l.b16 %v2070
    %v2241 = vunpack.c.h.b16 %v2070
    %v2242 = vunpack.c.l.b16 %v2071
    %v2243 = vunpack.c.h.b16 %v2071
    %v2244 = vunpack.c.l.b16 %v2072
    %v2245 = vunpack.c.h.b16 %v2072
    %v2246 = vunpack.c.l.b16 %v2073
    %v2247 = vunpack.c.h.b16 %v2073
    %v2248 = vunpack.c.l.b16 %v2074
    %v2249 = vunpack.c.h.b16 %v2074
    %v2250 = vunpack.c.l.b16 %v2075
    %v2251 = vunpack.c.h.b16 %v2075
    %v2252 = vunpack.c.l.b16 %v2076
    %v2253 = vunpack.c.h.b16 %v2076
    %v2254 = vunpack.c.l.b16 %v2077
    %v2255 = vunpack.c.h.b16 %v2077
    %v2256 = vunpack.c.l.b16 %v2078
    %v2257 = vunpack.c.h.b16 %v2078
    %v2258 = vunpack.c.l.b16 %v2079
    %v2259 = vunpack.c.h.b16 %v2079
    %v2260 = vunpack.c.l.b16 %v2080
    %v2261 = vunpack.c.h.b16 %v2080
    %v2262 = vunpack.c.l.b16 %v2081
    %v2263 = vunpack.c.h.b16 %v2081
    %v2264 = vunpack.c.l.b16 %v2082
    %v2265 = vunpack.c.h.b16 %v2082
    %v2266 = vunpack.c.l.b16 %v2083
    %v2267 = vunpack.c.h.b16 %v2083
    %v2268 = vunpack.c.l.b16 %v2084
    %v2269 = vunpack.c.h.b16 %v2084
    %v2270 = vunpack.c.l.b16 %v2085
    %v2271 = vunpack.c.h.b16 %v2085
    %v2272 = vunpack.c.l.b16 %v2086
    %v2273 = vunpack.c.h.b16 %v2086
    %v2274 = vunpack.c.l.b16 %v2087
    %v2275 = vunpack.c.h.b16 %v2087
    %v2276 = vunpack.c.l.b16 %v2088
    %v2277 = vunpack.c.h.b16 %v2088
    %v2278 = vunpack.c.l.b16 %v2089
    %v2279 = vunpack.c.h.b16 %v2089
    %v2280 = vunpack.c.l.b16 %v2090
    %v2281 = vunpack.c.h.b16 %v2090
    %v2282 = vunpack.c.l.b16 %v2091
    %v2283 = vunpack.c.h.b16 %v2091
    %v2284 = vunpack.c.l.b16 %v2092
    %v2285 = vunpack.c.h.b16 %v2092
    %v2286 = vunpack.c.l.b16 %v2093
    %v2287 = vunpack.c.h.b16 %v2093
    %v2288 = vunpack.c.l.b16 %v2094
    %v2289 = vunpack.c.h.b16 %v2094
    %v2290 = vunpack.c.l.b16 %v2095
    %v2291 = vunpack.c.h.b16 %v2095
    %v2292 = vunpack.c.l.b16 %v2096
    %v2293 = vunpack.c.h.b16 %v2096
    %v2294 = vunpack.c.l.b16 %v2097
    %v2295 = vunpack.c.h.b16 %v2097
    %v2296 = vpack.c.b16 %v2170, %v2168
    %v2297 = vpack.c.b16 %v2171, %v2169
    %v2298 = vpack.c.b16 %v2174, %v2172
    %v2299 = vpack.c.b16 %v2175, %v2173
    %v2300 = vpack.c.b16 %v2178, %v2176
    %v2301 = vpack.c.b16 %v2179, %v2177
    %v2302 = vpack.c.b16 %v2182, %v2180
    %v2303 = vpack.c.b16 %v2183, %v2181
    %v2304 = vpack.c.b16 %v2186, %v2184
    %v2305 = vpack.c.b16 %v2187, %v2185
    %v2306 = vpack.c.b16 %v2190, %v2188
    %v2307 = vpack.c.b16 %v2191, %v2189
    %v2308 = vpack.c.b16 %v2194, %v2192
    %v2309 = vpack.c.b16 %v2195, %v2193
    %v2310 = vpack.c.b16 %v2198, %v2196
    %v2311 = vpack.c.b16 %v2199, %v2197
    %v2312 = vpack.c.b16 %v2202, %v2200
    %v2313 = vpack.c.b16 %v2203, %v2201
    %v2314 = vpack.c.b16 %v2206, %v2204
    %v2315 = vpack.c.b16 %v2207, %v2205
    %v2316 = vpack.c.b16 %v2210, %v2208
    %v2317 = vpack.c.b16 %v2211, %v2209
    %v2318 = vpack.c.b16 %v2214, %v2212
    %v2319 = vpack.c.b16 %v2215, %v2213
    %v2320 = vpack.c.b16 %v2218, %v2216
    %v2321 = vpack.c.b16 %v2219, %v2217
    %v2322 = vpack.c.b16 %v2222, %v2220
    %v2323 = vpack.c.b16 %v2223, %v2221
    %v2324 = vpack.c.b16 %v2226, %v2224
    %v2325 = vpack.c.b16 %v2227, %v2225
    %v2326 = vpack.c.b16 %v2230, %v2228
    %v2327 = vpack.c.b16 %v2231, %v2229
    %v2328 = vpack.c.b16 %v2234, %v2232
    %v2329 = vpack.c.b16 %v2235, %v2233
    %v2330 = vpack.c.b16 %v2238, %v2236
    %v2331 = vpack.c.b16 %v2239, %v2237
    %v2332 = vpack.c.b16 %v2242, %v2240
    %v2333 = vpack.c.b16 %v2243, %v2241
    %v2334 = vpack.c.b16 %v2246, %v2244
    %v2335 = vpack.c.b16 %v2247, %v2245
    %v2336 = vpack.c.b16 %v2250, %v2248
    %v2337 = vpack.c.b16 %v2251, %v2249
    %v2338 = vpack.c.b16 %v2254, %v2252
    %v2339 = vpack.c.b16 %v2255, %v2253
    %v2340 = vpack.c.b16 %v2258, %v2256
    %v2341 = vpack.c.b16 %v2259, %v2257
    %v2342 = vpack.c.b16 %v2262, %v2260
    %v2343 = vpack.c.b16 %v2263, %v2261
    %v2344 = vpack.c.b16 %v2266, %v2264
    %v2345 = vpack.c.b16 %v2267, %v2265
    %v2346 = vpack.c.b16 %v2270, %v2268
    %v2347 = vpack.c.b16 %v2271, %v2269
    %v2348 = vpack.c.b16 %v2274, %v2272
    %v2349 = vpack.c.b16 %v2275, %v2273
    %v2350 = vpack.c.b16 %v2278, %v2276
    %v2351 = vpack.c.b16 %v2279, %v2277
    %v2352 = vpack.c.b16 %v2282, %v2280
    %v2353 = vpack.c.b16 %v2283, %v2281
    %v2354 = vpack.c.b16 %v2286, %v2284
    %v2355 = vpack.c.b16 %v2287, %v2285
    %v2356 = vpack.c.b16 %v2290, %v2288
    %v2357 = vpack.c.b16 %v2291, %v2289
    %v2358 = vpack.c.b16 %v2294, %v2292
    %v2359 = vpack.c.b16 %v2295, %v2293
    %2424 = vmatpush.bf16.msra.mxu0 %v2310
    %2425 = vmatpush.bf16.msra.mxu0 %v2308
    %2426 = vmatpush.bf16.msra.mxu0 %v2306
    %2427 = vmatpush.bf16.msra.mxu0 %v2304
    %2428 = vmatpush.bf16.msra.mxu0 %v2302
    %2429 = vmatpush.bf16.msra.mxu0 %v2300
    %2430 = vmatpush.bf16.msra.mxu0 %v2298
    %2431 = vmatpush.bf16.msra.mxu0 %v2296
    %2432 = vmatmul.bf16.gmra.mxu0 %v2030
    %v2433 = vpop.f32.mrf.mxu0
    %v2434 = vadd.f32 %v2100, %v2433
    %v2435 = vpop.f32.mrf.mxu0
    %2436 = vdwg.mxu0
    %2437 = vmatpush.bf16.msra.mxu0 %v2326
    %2438 = vmatpush.bf16.msra.mxu0 %v2324
    %2439 = vmatpush.bf16.msra.mxu0 %v2322
    %2440 = vmatpush.bf16.msra.mxu0 %v2320
    %2441 = vmatpush.bf16.msra.mxu0 %v2318
    %2442 = vmatpush.bf16.msra.mxu0 %v2316
    %2443 = vmatpush.bf16.msra.mxu0 %v2314
    %2444 = vmatpush.bf16.msra.mxu0 %v2312
    %2445 = vmatmul.bf16.gmra.mxu0 %v2031
    %v2446 = vpop.f32.mrf.mxu0
    %v2447 = vadd.f32 %v2434, %v2446
    %v2448 = vpop.f32.mrf.mxu0
    %2449 = vdwg.mxu0
    %2450 = vmatpush.bf16.msra.mxu0 %v2342
    %2451 = vmatpush.bf16.msra.mxu0 %v2340
    %2452 = vmatpush.bf16.msra.mxu0 %v2338
    %2453 = vmatpush.bf16.msra.mxu0 %v2336
    %2454 = vmatpush.bf16.msra.mxu0 %v2334
    %2455 = vmatpush.bf16.msra.mxu0 %v2332
    %2456 = vmatpush.bf16.msra.mxu0 %v2330
    %2457 = vmatpush.bf16.msra.mxu0 %v2328
    %2458 = vmatmul.bf16.gmra.mxu0 %v2032
    %v2459 = vpop.f32.mrf.mxu0
    %v2460 = vadd.f32 %v2447, %v2459
    %v2461 = vpop.f32.mrf.mxu0
    %2462 = vdwg.mxu0
    %2463 = vmatpush.bf16.msra.mxu0 %v2358
    %2464 = vmatpush.bf16.msra.mxu0 %v2356
    %2465 = vmatpush.bf16.msra.mxu0 %v2354
    %2466 = vmatpush.bf16.msra.mxu0 %v2352
    %2467 = vmatpush.bf16.msra.mxu0 %v2350
    %2468 = vmatpush.bf16.msra.mxu0 %v2348
    %2469 = vmatpush.bf16.msra.mxu0 %v2346
    %2470 = vmatpush.bf16.msra.mxu0 %v2344
    %2471 = vmatmul.bf16.gmra.mxu0 %v2033
    %v2472 = vpop.f32.mrf.mxu0
    %v2473 = vadd.f32 %v2460, %v2472
    %v2474 = vpop.f32.mrf.mxu0
    %2475 = vdwg.mxu0
    %2476 = vmatpush.bf16.msra.mxu0 %v2311
    %2477 = vmatpush.bf16.msra.mxu0 %v2309
    %2478 = vmatpush.bf16.msra.mxu0 %v2307
    %2479 = vmatpush.bf16.msra.mxu0 %v2305
    %2480 = vmatpush.bf16.msra.mxu0 %v2303
    %2481 = vmatpush.bf16.msra.mxu0 %v2301
    %2482 = vmatpush.bf16.msra.mxu0 %v2299
    %2483 = vmatpush.bf16.msra.mxu0 %v2297
    %2484 = vmatmul.bf16.gmra.mxu0 %v2030
    %v2485 = vpop.f32.mrf.mxu0
    %v2486 = vadd.f32 %v2101, %v2485
    %v2487 = vpop.f32.mrf.mxu0
    %2488 = vdwg.mxu0
    %2489 = vmatpush.bf16.msra.mxu0 %v2327
    %2490 = vmatpush.bf16.msra.mxu0 %v2325
    %2491 = vmatpush.bf16.msra.mxu0 %v2323
    %2492 = vmatpush.bf16.msra.mxu0 %v2321
    %2493 = vmatpush.bf16.msra.mxu0 %v2319
    %2494 = vmatpush.bf16.msra.mxu0 %v2317
    %2495 = vmatpush.bf16.msra.mxu0 %v2315
    %2496 = vmatpush.bf16.msra.mxu0 %v2313
    %2497 = vmatmul.bf16.gmra.mxu0 %v2031
    %v2498 = vpop.f32.mrf.mxu0
    %v2499 = vadd.f32 %v2486, %v2498
    %v2500 = vpop.f32.mrf.mxu0
    %2501 = vdwg.mxu0
    %2502 = vmatpush.bf16.msra.mxu0 %v2343
    %2503 = vmatpush.bf16.msra.mxu0 %v2341
    %2504 = vmatpush.bf16.msra.mxu0 %v2339
    %2505 = vmatpush.bf16.msra.mxu0 %v2337
    %2506 = vmatpush.bf16.msra.mxu0 %v2335
    %2507 = vmatpush.bf16.msra.mxu0 %v2333
    %2508 = vmatpush.bf16.msra.mxu0 %v2331
    %2509 = vmatpush.bf16.msra.mxu0 %v2329
    %2510 = vmatmul.bf16.gmra.mxu0 %v2032
    %v2511 = vpop.f32.mrf.mxu0
    %v2512 = vadd.f32 %v2499, %v2511
    %v2513 = vpop.f32.mrf.mxu0
    %2514 = vdwg.mxu0
    %2515 = vmatpush.bf16.msra.mxu0 %v2359
    %2516 = vmatpush.bf16.msra.mxu0 %v2357
    %2517 = vmatpush.bf16.msra.mxu0 %v2355
    %2518 = vmatpush.bf16.msra.mxu0 %v2353
    %2519 = vmatpush.bf16.msra.mxu0 %v2351
    %2520 = vmatpush.bf16.msra.mxu0 %v2349
    %2521 = vmatpush.bf16.msra.mxu0 %v2347
    %2522 = vmatpush.bf16.msra.mxu0 %v2345
    %2523 = vmatmul.bf16.gmra.mxu0 %v2033
    %v2524 = vpop.f32.mrf.mxu0
    %v2525 = vadd.f32 %v2512, %v2524
    %v2526 = vpop.f32.mrf.mxu0
    %2527 = vdwg.mxu0
    %v2528 = vmax.f32 %v2473, 0.0
    %v2529 = vmax.f32 %v2525, 0.0
    %v2530 = vpack.c.bf16 %v2528, %v2528
    %v2531 = vpack.c.bf16 %v2529, %v2529
    %v2532 = vld [vmem:[#allocation13] sm:$0xf]
    %v2533 = vld [vmem:[#allocation13 + $0x4] sm:$0xf]
    %v2534 = vld [vmem:[#allocation13 + $0x8] sm:$0xf]
    %v2535 = vld [vmem:[#allocation13 + $0xc] sm:$0xf]
    %v2536 = vld [vmem:[#allocation13 + $0x10] sm:$0xf]
    %v2537 = vld [vmem:[#allocation13 + $0x14] sm:$0xf]
    %v2538 = vld [vmem:[#allocation13 + $0x18] sm:$0xf]
    %v2539 = vld [vmem:[#allocation13 + $0x1c] sm:$0xf]
    %v2540 = vld [vmem:[#allocation13 + $0x20] sm:$0xf]
    %v2541 = vld [vmem:[#allocation13 + $0x24] sm:$0xf]
    %v2542 = vld [vmem:[#allocation13 + $0x28] sm:$0xf]
    %v2543 = vld [vmem:[#allocation13 + $0x2c] sm:$0xf]
    %v2544 = vld [vmem:[#allocation13 + $0x30] sm:$0xf]
    %v2545 = vld [vmem:[#allocation13 + $0x34] sm:$0xf]
    %v2546 = vld [vmem:[#allocation13 + $0x38] sm:$0xf]
    %v2547 = vld [vmem:[#allocation13 + $0x3c] sm:$0xf]
    %v2548 = vld [vmem:[#allocation13 + $0x40] sm:$0xf]
    %v2549 = vld [vmem:[#allocation13 + $0x44] sm:$0xf]
    %v2550 = vld [vmem:[#allocation13 + $0x48] sm:$0xf]
    %v2551 = vld [vmem:[#allocation13 + $0x4c] sm:$0xf]
    %v2552 = vld [vmem:[#allocation13 + $0x50] sm:$0xf]
    %v2553 = vld [vmem:[#allocation13 + $0x54] sm:$0xf]
    %v2554 = vld [vmem:[#allocation13 + $0x58] sm:$0xf]
    %v2555 = vld [vmem:[#allocation13 + $0x5c] sm:$0xf]
    %v2556 = vld [vmem:[#allocation13 + $0x60] sm:$0xf]
    %v2557 = vld [vmem:[#allocation13 + $0x64] sm:$0xf]
    %v2558 = vld [vmem:[#allocation13 + $0x68] sm:$0xf]
    %v2559 = vld [vmem:[#allocation13 + $0x6c] sm:$0xf]
    %v2560 = vld [vmem:[#allocation13 + $0x70] sm:$0xf]
    %v2561 = vld [vmem:[#allocation13 + $0x74] sm:$0xf]
    %v2562 = vld [vmem:[#allocation13 + $0x78] sm:$0xf]
    %v2563 = vld [vmem:[#allocation13 + $0x7c] sm:$0xf]
    %v2564 = vld [vmem:[%s8] sm:$0x1]
    %v2566 = vperm.slane %v2564, 0
    %v2600 = vunpack.c.l.b16 %v2532
    %v2601 = vunpack.c.l.b16 %v2533
    %v2602 = vunpack.c.l.b16 %v2534
    %v2603 = vunpack.c.l.b16 %v2535
    %v2604 = vunpack.c.l.b16 %v2536
    %v2605 = vunpack.c.l.b16 %v2537
    %v2606 = vunpack.c.l.b16 %v2538
    %v2607 = vunpack.c.l.b16 %v2539
    %v2608 = vunpack.c.l.b16 %v2540
    %v2609 = vunpack.c.l.b16 %v2541
    %v2610 = vunpack.c.l.b16 %v2542
    %v2611 = vunpack.c.l.b16 %v2543
    %v2612 = vunpack.c.l.b16 %v2544
    %v2613 = vunpack.c.l.b16 %v2545
    %v2614 = vunpack.c.l.b16 %v2546
    %v2615 = vunpack.c.l.b16 %v2547
    %v2616 = vunpack.c.l.b16 %v2548
    %v2617 = vunpack.c.l.b16 %v2549
    %v2618 = vunpack.c.l.b16 %v2550
    %v2619 = vunpack.c.l.b16 %v2551
    %v2620 = vunpack.c.l.b16 %v2552
    %v2621 = vunpack.c.l.b16 %v2553
    %v2622 = vunpack.c.l.b16 %v2554
    %v2623 = vunpack.c.l.b16 %v2555
    %v2624 = vunpack.c.l.b16 %v2556
    %v2625 = vunpack.c.l.b16 %v2557
    %v2626 = vunpack.c.l.b16 %v2558
    %v2627 = vunpack.c.l.b16 %v2559
    %v2628 = vunpack.c.l.b16 %v2560
    %v2629 = vunpack.c.l.b16 %v2561
    %v2630 = vunpack.c.l.b16 %v2562
    %v2631 = vunpack.c.l.b16 %v2563
    %v2632 = vpack.c.b16 %v2601, %v2600
    %v2633 = vpack.c.b16 %v2603, %v2602
    %v2634 = vpack.c.b16 %v2605, %v2604
    %v2635 = vpack.c.b16 %v2607, %v2606
    %v2636 = vpack.c.b16 %v2609, %v2608
    %v2637 = vpack.c.b16 %v2611, %v2610
    %v2638 = vpack.c.b16 %v2613, %v2612
    %v2639 = vpack.c.b16 %v2615, %v2614
    %v2640 = vpack.c.b16 %v2617, %v2616
    %v2641 = vpack.c.b16 %v2619, %v2618
    %v2642 = vpack.c.b16 %v2621, %v2620
    %v2643 = vpack.c.b16 %v2623, %v2622
    %v2644 = vpack.c.b16 %v2625, %v2624
    %v2645 = vpack.c.b16 %v2627, %v2626
    %v2646 = vpack.c.b16 %v2629, %v2628
    %v2647 = vpack.c.b16 %v2631, %v2630
    %2664 = vmatpush.bf16.msra.mxu0 %v2639
    %2665 = vmatpush.bf16.msra.mxu0 %v2638
    %2666 = vmatpush.bf16.msra.mxu0 %v2637
    %2667 = vmatpush.bf16.msra.mxu0 %v2636
    %2668 = vmatpush.bf16.msra.mxu0 %v2635
    %2669 = vmatpush.bf16.msra.mxu0 %v2634
    %2670 = vmatpush.bf16.msra.mxu0 %v2633
    %2671 = vmatpush.bf16.msra.mxu0 %v2632
    %2672 = vmatmul.bf16.gmra.mxu0 %v2530
    %v2673 = vpop.f32.mrf.mxu0
    %v2674 = vadd.f32 %v2566, %v2673
    %v2675 = vpop.f32.mrf.mxu0
    %2676 = vdwg.mxu0
    %2677 = vmatpush.bf16.msra.mxu0 %v2647
    %2678 = vmatpush.bf16.msra.mxu0 %v2646
    %2679 = vmatpush.bf16.msra.mxu0 %v2645
    %2680 = vmatpush.bf16.msra.mxu0 %v2644
    %2681 = vmatpush.bf16.msra.mxu0 %v2643
    %2682 = vmatpush.bf16.msra.mxu0 %v2642
    %2683 = vmatpush.bf16.msra.mxu0 %v2641
    %2684 = vmatpush.bf16.msra.mxu0 %v2640
    %2685 = vmatmul.bf16.gmra.mxu0 %v2531
    %v2686 = vpop.f32.mrf.mxu0
    %v2687 = vadd.f32 %v2674, %v2686
    %v2688 = vpop.f32.mrf.mxu0
    %2689 = vdwg.mxu0
    %v2690 = vmax.f32 %v2687, 0.0
    %v2691 = vpack.c.bf16 %v2690, %v2690
    %v2692 = vld [vmem:[#allocation14] sm:$0xf]
    %v2693 = vld [vmem:[#allocation14 + $0x4] sm:$0xf]
    %v2694 = vld [vmem:[#allocation14 + $0x8] sm:$0xf]
    %v2695 = vld [vmem:[#allocation14 + $0xc] sm:$0xf]
    %v2696 = vld [vmem:[#allocation14 + $0x10] sm:$0xf]
    %v2697 = vld [vmem:[#allocation14 + $0x14] sm:$0xf]
    %v2698 = vld [vmem:[#allocation14 + $0x18] sm:$0xf]
    %v2699 = vld [vmem:[#allocation14 + $0x1c] sm:$0xf]
    %v2700 = vld [vmem:[#allocation14 + $0x20] sm:$0xf]
    %v2701 = vld [vmem:[#allocation14 + $0x24] sm:$0xf]
    %v2702 = vld [vmem:[#allocation14 + $0x28] sm:$0xf]
    %v2703 = vld [vmem:[#allocation14 + $0x2c] sm:$0xf]
    %v2704 = vld [vmem:[#allocation14 + $0x30] sm:$0xf]
    %v2705 = vld [vmem:[#allocation14 + $0x34] sm:$0xf]
    %v2706 = vld [vmem:[#allocation14 + $0x38] sm:$0xf]
    %v2707 = vld [vmem:[#allocation14 + $0x3c] sm:$0xf]
    %v2708 = vld [vmem:[%s10] sm:$0x1]
    %v2710 = vperm.slane %v2708, 0
    %v2728 = vunpack.c.l.b16 %v2692
    %v2729 = vunpack.c.l.b16 %v2693
    %v2730 = vunpack.c.l.b16 %v2694
    %v2731 = vunpack.c.l.b16 %v2695
    %v2732 = vunpack.c.l.b16 %v2696
    %v2733 = vunpack.c.l.b16 %v2697
    %v2734 = vunpack.c.l.b16 %v2698
    %v2735 = vunpack.c.l.b16 %v2699
    %v2736 = vunpack.c.l.b16 %v2700
    %v2737 = vunpack.c.l.b16 %v2701
    %v2738 = vunpack.c.l.b16 %v2702
    %v2739 = vunpack.c.l.b16 %v2703
    %v2740 = vunpack.c.l.b16 %v2704
    %v2741 = vunpack.c.l.b16 %v2705
    %v2742 = vunpack.c.l.b16 %v2706
    %v2743 = vunpack.c.l.b16 %v2707
    %v2744 = vpack.c.b16 %v2729, %v2728
    %v2745 = vpack.c.b16 %v2731, %v2730
    %v2746 = vpack.c.b16 %v2733, %v2732
    %v2747 = vpack.c.b16 %v2735, %v2734
    %v2748 = vpack.c.b16 %v2737, %v2736
    %v2749 = vpack.c.b16 %v2739, %v2738
    %v2750 = vpack.c.b16 %v2741, %v2740
    %v2751 = vpack.c.b16 %v2743, %v2742
    %2760 = vmatpush.bf16.msra.mxu0 %v2751
    %2761 = vmatpush.bf16.msra.mxu0 %v2750
    %2762 = vmatpush.bf16.msra.mxu0 %v2749
    %2763 = vmatpush.bf16.msra.mxu0 %v2748
    %2764 = vmatpush.bf16.msra.mxu0 %v2747
    %2765 = vmatpush.bf16.msra.mxu0 %v2746
    %2766 = vmatpush.bf16.msra.mxu0 %v2745
    %2767 = vmatpush.bf16.msra.mxu0 %v2744
    %2768 = vmatmul.bf16.gmra.mxu0 %v2691
    %v2769 = vpop.f32.mrf.mxu0
    %v2770 = vadd.f32 %v2710, %v2769
    %v2771 = vpop.f32.mrf.mxu0
    %2772 = vdwg.mxu0
    %v2773 = vsub.f32 0.0, %v2770
    %v2774 = vmul.f32 %v2773, 1.442695
    %v2775 = vpow.pop %v2774
    %v2776 = vadd.f32 %v2775, 1.0
    %v2777 = vrcp.pop %v2776
    %2778 = vst [vmem:[#allocation16] sm:$0xff] %v2777
    // Predicated region
    $region78: #{tpu_custom_call.1} parent=1 // pred_check
      _
    $region79: #{tpu_custom_call.1} parent=1 // pred_check_branch
      %2780 = sbr.rel (0) target = $region81
    $region80: #{tpu_custom_call.1} parent=1 // pred_region
      %2782 = vsyncadd [#allocation4], 0
      %s2784 = sshll.u32 [#allocation16], 4
      %s2785 = int_to_ptr.vmem [resolvable:$true] %s2784
      %s2786 = sshll.u32 %s11, 4
      %s2787 = int_to_ptr.hbm [resolvable:$true] %s2786
      %2789 = dma.vmem_to_hbm [thread:$0]  %s2785, 128, %s2787, [#allocation4]
    $region81: #{tpu_custom_call.1} parent=1 // pred_fallthru
      _
    // Predicated region
    $region82: #{tpu_custom_call.1} parent=1 // pred_check
      _
    $region83: #{tpu_custom_call.1} parent=1 // pred_check_branch
      %2791 = sbr.rel (0) target = $region85
    $region84: #{tpu_custom_call.1} parent=1 // pred_region
      %2793 = dma.done [#allocation4], 128
    $region85: #{tpu_custom_call.1} parent=1 // pred_fallthru
      _
    %2794 = vsyncpa [#allocation3], 1
    %2795 = vsyncpa [#allocation6], 1
    %2796 = vsyncpa [#allocation9], 1
    %2797 = vsyncpa [#allocation12], 1
    %2798 = vsyncpa [#allocation15], 1
    %2799 = vsyncpa [#allocation4], 1

</llo_original>
